<compile_context>
chip_gen: v7x
topology: tpu7x:2x2x1
jax: 0.10.0
libtpu: 0.0.40
codegen_flags: <defaults>
</compile_context>

<pallas_src>
import functools
from typing import Any, NamedTuple

import jax
import jax.numpy as jnp
from jax.experimental import pallas as pl
from jax.experimental.pallas import tpu as pltpu


def _round_up(n, m):
    return ((n + m - 1) // m) * m


def _cdiv(a, b):
    return (a + b - 1) // b


def _device_kind():
    try:
        return jax.devices()[0].device_kind.lower()
    except Exception:
        return ""


def _vmem_capacity_bytes():
    try:
        return int(pltpu.get_tpu_info().vmem_capacity_bytes)
    except Exception:
        pass
    kind = _device_kind()
    if "v7" in kind:
        return 64 * 1024 * 1024
    return 128 * 1024 * 1024


class LSTMPlan(NamedTuple):
    batch_size: int
    input_size: int
    hidden_size: int
    Ip: int            # padded input features
    Hp: int            # padded hidden features
    TH: int            # hidden tile (per gate), multiple of align
    n_h: int           # hidden tiles (grid axis 0)
    TB: int            # batch tile, multiple of 8
    n_b: int           # batch tiles (grid axis 1)
    Bp: int            # padded batch
    compute_dtype: Any
    vmem_limit: int
    weight_buffers: int  # 1 -> single-buffer the grid-constant weight blocks
    stream_buffers: int  # 3 -> deeper buffering of streamed activations (v5e)


def make_lstm_plan(batch_size, input_size, hidden_size, *,
                   compute_dtype=jnp.bfloat16, block_b=256):
    """One-time, generation-aware tiling plan for the LSTM cell kernel."""
    kind = _device_kind()
    # v6e / v7x MXUs are 2x256x256 -> pad K / N to 256; v5e (128x128) keeps 128.
    align = 256 if ("v6" in kind or "v7" in kind) else 128
    vmem_cap = _vmem_capacity_bytes()
    # ~48 MiB on v7x (64 MiB physical), ~96 MiB on v5e/v6e (128 MiB physical).
    vmem_limit = min(vmem_cap * 3 // 4, 100 * 1024 * 1024)

    Hp = _round_up(max(hidden_size, align), align)
    Ip = _round_up(max(input_size, align), align)
    cbytes = jnp.dtype(compute_dtype).itemsize

    # --- hidden tiling: weights stay VMEM-resident (single buffer) when they
    # fit; otherwise stream double-buffered 4*TH column slabs (large H / v7x).
    def w_bytes(th, nbuf):
        return ((Ip + Hp) * 4 * th * cbytes + 4 * th * 4) * nbuf

    n_h, TH = 1, Hp
    while True:
        nbuf = 1 if n_h == 1 else 2
        if w_bytes(TH, nbuf) <= vmem_limit // 2 or TH <= align:
            break
        nxt = n_h * 2
        if Hp % nxt != 0 or (Hp // nxt) % align != 0:
            break
        n_h, TH = nxt, Hp // nxt

    # --- batch tiling: balanced tiles (minimal padding for ragged B); make
    # sure there are >= 2 grid steps when B allows so dimension_semantics
    # ("parallel") can split across both v7x TensorCores.
    TB_cap = max(8, min(block_b, _round_up(batch_size, 8)))
    if batch_size >= 16 and n_h == 1:
        TB_cap = min(TB_cap, _round_up(_cdiv(batch_size, 2), 8))
    n_b = max(1, _cdiv(batch_size, TB_cap))
    TB = _round_up(_cdiv(batch_size, n_b), 8)

    # --- VMEM budget check incl. f32 gates intermediate and streamed buffers;
    # shrink TB (not the weight slab) if the budget would be exceeded.
    def tile_bytes(tb, th):
        w = w_bytes(th, 1 if n_h == 1 else 2)
        streams = 2 * tb * (Ip + Hp) * cbytes + 2 * tb * th * 4   # x, h + cx
        outs = 2 * tb * th * (4 + 4)                              # hy + cy
        gates = tb * 4 * th * 4                                   # f32 gates
        return w + streams + outs + gates

    while TB > 8 and tile_bytes(TB, TH) > int(0.9 * vmem_limit):
        TB = _round_up(_cdiv(TB, 2), 8)
        n_b = _cdiv(batch_size, TB)
    Bp = TB * n_b

    weight_buffers = 1 if n_h == 1 else 2
    # v5e, tiny matmuls: deeper buffering on streamed activations hides the
    # exposed DMA latency of the lower-bandwidth HBM (only useful if >=3 steps).
    stream_buffers = 3 if ("v5" in kind and Hp <= 256 and n_h == 1 and n_b >= 3) else 2

    return LSTMPlan(batch_size, input_size, hidden_size, Ip, Hp, TH, n_h,
                    TB, n_b, Bp, compute_dtype, int(vmem_limit),
                    weight_buffers, stream_buffers)


def pack_lstm_params(w_xh, w_hh, b_xh, b_hh, plan):
    """One-time repack of PyTorch nn.Linear-layout params into kernel layout.

    w_xh: (4H, I), w_hh: (4H, H), b_xh/b_hh: (4H,), gate order [i, f, g, o].
    Returns:
      wx_p: (Ip, 4*Hp) compute_dtype, wh_p: (Hp, 4*Hp) compute_dtype,
      b_p:  (1,  4*Hp) float32.
    Columns are grouped per hidden tile of size TH (tile-major, then gate), so
    each (.., 4*TH) column slab holds all four gates of one output tile.
    """
    I, H = plan.input_size, plan.hidden_size
    Ip, Hp, TH, n_h = plan.Ip, plan.Hp, plan.TH, plan.n_h
    cd = plan.compute_dtype

    def pack_w(w, rows, rows_p):
        w = w.T.reshape(rows, 4, H).astype(jnp.float32)
        w = jnp.pad(w, ((0, rows_p - rows), (0, 0), (0, Hp - H)))
        w = w.reshape(rows_p, 4, n_h, TH).transpose(0, 2, 1, 3)
        return w.reshape(rows_p, 4 * Hp).astype(cd)

    wx_p = pack_w(w_xh, I, Ip)
    wh_p = pack_w(w_hh, H, Hp)

    b = (b_xh.astype(jnp.float32) + b_hh.astype(jnp.float32)).reshape(4, H)
    b = jnp.pad(b, ((0, 0), (0, Hp - H)))
    b_p = b.reshape(4, n_h, TH).transpose(1, 0, 2).reshape(1, 4 * Hp)
    return wx_p, wh_p, b_p


def lstm_cell_kernel(x_ref, h_ref, c_ref, wx_ref, wh_ref, b_ref, hy_ref, cy_ref):
    # Fused MXU contractions of both Linear layers, f32 accumulation:
    #   gates = x @ Wx[:, slab] + h @ Wh[:, slab] + b[slab]
    gates = (
        jnp.dot(x_ref[...], wx_ref[...], preferred_element_type=jnp.float32)
        + jnp.dot(h_ref[...], wh_ref[...], preferred_element_type=jnp.float32)
        + b_ref[...]
    )
    th = hy_ref.shape[-1]
    # TH is a multiple of 128 -> whole-vreg, lane-aligned gate slices.
    i_t = jax.nn.sigmoid(gates[:, 0 * th:1 * th])
    f_t = jax.nn.sigmoid(gates[:, 1 * th:2 * th])
    g_t = jnp.tanh(gates[:, 2 * th:3 * th])
    o_t = jax.nn.sigmoid(gates[:, 3 * th:4 * th])

    cx = c_ref[...].astype(jnp.float32)
    cy = cx * f_t + i_t * g_t
    hy = o_t * jnp.tanh(cy)

    cy_ref[...] = cy.astype(cy_ref.dtype)
    hy_ref[...] = hy.astype(hy_ref.dtype)


def _bspec(shape, index_map, buffers=2):
    if buffers == 2:                       # default pipeline (double-buffered)
        return pl.BlockSpec(shape, index_map)
    return pl.BlockSpec(shape, index_map, pipeline_mode=pl.Buffered(buffers))


@functools.partial(jax.jit, static_argnames=("plan", "use_custom_buffering"))
def _lstm_cell_step(x, hx, cx, wx_p, wh_p, b_p, plan, use_custom_buffering=True):
    B, I, H = plan.batch_size, plan.input_size, plan.hidden_size
    Ip, Hp, TH, n_h = plan.Ip, plan.Hp, plan.TH, plan.n_h
    TB, n_b, Bp = plan.TB, plan.n_b, plan.Bp
    cd = plan.compute_dtype
    out_dtype = x.dtype
    assert x.shape == (B, I) and hx.shape == (B, H) and cx.shape == (B, H)

    # Activation padding / cast only (no [x|h] concat -> no extra HBM pass).
    xp = jnp.pad(x, ((0, Bp - B), (0, Ip - I))).astype(cd)
    hp = jnp.pad(hx, ((0, Bp - B), (0, Hp - H))).astype(cd)
    cp = jnp.pad(cx, ((0, Bp - B), (0, Hp - H)))

    wbuf = plan.weight_buffers if use_custom_buffering else 2
    sbuf = plan.stream_buffers if use_custom_buffering else 2

    # Hidden axis outer -> each weight slab stays resident across the inner
    # batch loop; batch axis inner streams activations / outputs.
    grid = (n_h, n_b)

    cbytes = jnp.dtype(cd).itemsize
    cost = pl.CostEstimate(
        flops=2 * Bp * (Ip + Hp) * 4 * Hp,
        transcendentals=5 * Bp * Hp,
        bytes_accessed=(n_h * Bp * (Ip + Hp) * cbytes                 # x, h
                        + Bp * Hp * cp.dtype.itemsize                 # cx
                        + (Ip + Hp) * 4 * Hp * cbytes + 4 * Hp * 4    # W + b
                        + Bp * Hp * (jnp.dtype(out_dtype).itemsize + 4)),  # hy+cy
    )

    hy, cy = pl.pallas_call(
        lstm_cell_kernel,
        out_shape=(
            jax.ShapeDtypeStruct((Bp, Hp), out_dtype),    # hy
            jax.ShapeDtypeStruct((Bp, Hp), jnp.float32),  # cy kept in f32
        ),
        grid=grid,
        in_specs=[
            _bspec((TB, Ip), lambda h, b: (b, 0), sbuf),       # x streams per batch tile
            _bspec((TB, Hp), lambda h, b: (b, 0), sbuf),       # hx streams per batch tile
            _bspec((TB, TH), lambda h, b: (b, h), sbuf),       # cx streams per tile
            _bspec((Ip, 4 * TH), lambda h, b: (0, h), wbuf),   # W_x slab (resident if n_h==1)
            _bspec((Hp, 4 * TH), lambda h, b: (0, h), wbuf),   # W_h slab
            _bspec((1, 4 * TH), lambda h, b: (0, h), wbuf),    # bias
        ],
        out_specs=(
            pl.BlockSpec((TB, TH), lambda h, b: (b, h)),
            pl.BlockSpec((TB, TH), lambda h, b: (b, h)),
        ),
        compiler_params=pltpu.CompilerParams(
            # independent output tiles on both axes -> megacore split on v7x
            dimension_semantics=("parallel", "parallel"),
            vmem_limit_bytes=plan.vmem_limit,
        ),
        cost_estimate=cost,
    )(xp, hp, cp, wx_p, wh_p, b_p)

    return hy[:B, :H], cy[:B, :H]


_CUSTOM_BUFFERING_OK = True


def lstm_cell_step(x, hx, cx, wx_p, wh_p, b_p, plan):
    """Single LSTMCell forward step: returns (hy, cy), hy in x.dtype, cy in f32."""
    global _CUSTOM_BUFFERING_OK
    if _CUSTOM_BUFFERING_OK:
        try:
            return _lstm_cell_step(x, hx, cx, wx_p, wh_p, b_p, plan=plan,
                                   use_custom_buffering=True)
        except Exception:
            # Fallback if this JAX build rejects pipeline_mode=pl.Buffered(n)
            # on pallas_call BlockSpecs — default double buffering is correct,
            # just uses more VMEM.
            _CUSTOM_BUFFERING_OK = False
    return _lstm_cell_step(x, hx, cx, wx_p, wh_p, b_p, plan=plan,
                           use_custom_buffering=False)


def make_params(key, input_size, hidden_size, dtype=jnp.float32):
    """Deterministic init mimicking reset_parameters(): U(-std, std), std=1/sqrt(H)."""
    std = 1.0 / jnp.sqrt(jnp.array(hidden_size, jnp.float32))
    k1, k2, k3, k4 = jax.random.split(key, 4)
    # PyTorch Linear weights are (out_features, in_features).
    w_xh = jax.random.uniform(k1, (4 * hidden_size, input_size), dtype, -std, std)
    w_hh = jax.random.uniform(k2, (4 * hidden_size, hidden_size), dtype, -std, std)
    b_xh = jax.random.uniform(k3, (4 * hidden_size,), dtype, -std, std)
    b_hh = jax.random.uniform(k4, (4 * hidden_size,), dtype, -std, std)
    return w_xh, w_hh, b_xh, b_hh


def reference_lstm_cell(x, hx, cx, w_xh, w_hh, b_xh, b_hh):
    """Pure-JAX reference matching the PyTorch forward exactly."""
    gates = x @ w_xh.T + b_xh + hx @ w_hh.T + b_hh
    H = hx.shape[-1]
    i_t = jax.nn.sigmoid(gates[:, 0 * H:1 * H])
    f_t = jax.nn.sigmoid(gates[:, 1 * H:2 * H])
    g_t = jnp.tanh(gates[:, 2 * H:3 * H])
    o_t = jax.nn.sigmoid(gates[:, 3 * H:4 * H])
    cy = cx * f_t + i_t * g_t
    hy = o_t * jnp.tanh(cy)
    return hy, cy


if __name__ == "__main__":
    B, I, H = 8, 32, 32

    key = jax.random.PRNGKey(0)
    kx, kh, kc, kp = jax.random.split(key, 4)
    x = jax.random.normal(kx, (B, I), jnp.float32)
    hx = jax.random.normal(kh, (B, H), jnp.float32)
    cx = jax.random.normal(kc, (B, H), jnp.float32)
    w_xh, w_hh, b_xh, b_hh = make_params(kp, I, H)

    hy_ref, cy_ref = reference_lstm_cell(x, hx, cx, w_xh, w_hh, b_xh, b_hh)

    # f32 MXU-input path -- tight tolerance vs. the PyTorch/JAX semantics.
    plan32 = make_lstm_plan(B, I, H, compute_dtype=jnp.float32)
    wx32, wh32, bias32 = pack_lstm_params(w_xh, w_hh, b_xh, b_hh, plan32)  # one-time
    hy, cy = lstm_cell_step(x, hx, cx, wx32, wh32, bias32, plan32)
    jax.block_until_ready((hy, cy))
    assert hy.shape == (B, H) and cy.shape == (B, H)
    assert jnp.allclose(hy, hy_ref, atol=2e-4, rtol=1e-4), "hy mismatch (f32)"
    assert jnp.allclose(cy, cy_ref, atol=2e-4, rtol=1e-4), "cy mismatch (f32)"

    # bf16 MXU-input path (perf default) -- f32 accumulation, loose tolerance.
    plan16 = make_lstm_plan(B, I, H, compute_dtype=jnp.bfloat16)
    wx16, wh16, bias16 = pack_lstm_params(w_xh, w_hh, b_xh, b_hh, plan16)
    hy_bf, cy_bf = lstm_cell_step(x, hx, cx, wx16, wh16, bias16, plan16)
    jax.block_until_ready((hy_bf, cy_bf))
    assert jnp.allclose(hy_bf, hy_ref, atol=3e-2, rtol=3e-2), "hy mismatch (bf16)"
    assert jnp.allclose(cy_bf, cy_ref, atol=3e-2, rtol=3e-2), "cy mismatch (bf16)"

    print("KERNEL_OK")
</pallas_src>

<mosaic_0001>
module attributes {stable_mosaic.version = 11 : i64} {
  func.func @lstm_cell_kernel(%arg0: i32, %arg1: i32, %arg2: memref<8x128xf32, #tpu.memory_space<vmem>>, %arg3: memref<8x128xf32, #tpu.memory_space<vmem>>, %arg4: memref<8x128xf32, #tpu.memory_space<vmem>>, %arg5: memref<128x512xf32, #tpu.memory_space<vmem>>, %arg6: memref<128x512xf32, #tpu.memory_space<vmem>>, %arg7: memref<1x512xf32, #tpu.memory_space<vmem>>, %arg8: memref<8x128xf32, #tpu.memory_space<vmem>>, %arg9: memref<8x128xf32, #tpu.memory_space<vmem>>) attributes {dimension_semantics = [#tpu.dimension_semantics<parallel>, #tpu.dimension_semantics<parallel>], iteration_bounds = array<i64: 1, 1>, scalar_prefetch = 0 : i64, scratch_operands = 0 : i64, tpu.core_type = #tpu.core_type<tc>, window_params = [{transform_indices = @transform_0, window_bounds = array<i64: 8, 128>}, {transform_indices = @transform_1, window_bounds = array<i64: 8, 128>}, {transform_indices = @transform_2, window_bounds = array<i64: 8, 128>}, {pipeline_mode = #tpu.pipeline_mode<synchronous>, transform_indices = @transform_3, window_bounds = array<i64: 128, 512>}, {pipeline_mode = #tpu.pipeline_mode<synchronous>, transform_indices = @transform_4, window_bounds = array<i64: 128, 512>}, {pipeline_mode = #tpu.pipeline_mode<synchronous>, transform_indices = @transform_5, window_bounds = array<i64: 1, 512>}, {transform_indices = @transform_6, window_bounds = array<i64: 8, 128>}, {transform_indices = @transform_7, window_bounds = array<i64: 8, 128>}]} {
    %c0 = arith.constant 0 : index
    %c0_0 = arith.constant 0 : index
    %0 = vector.load %arg2[%c0, %c0_0] : memref<8x128xf32, #tpu.memory_space<vmem>>, vector<8x128xf32>
    %c0_1 = arith.constant 0 : index
    %c0_2 = arith.constant 0 : index
    %1 = vector.load %arg5[%c0_1, %c0_2] : memref<128x512xf32, #tpu.memory_space<vmem>>, vector<128x512xf32>
    %cst = arith.constant dense<0.000000e+00> : vector<8x512xf32>
    %2 = tpu.matmul %0, %1, %cst {dimension_numbers = #tpu.dot_dimension_numbers<[1], [0], [0], [1], [0, 0, 1, 1], [], []>} : vector<8x128xf32>, vector<128x512xf32>, vector<8x512xf32> -> vector<8x512xf32>
    %c0_3 = arith.constant 0 : index
    %c0_4 = arith.constant 0 : index
    %3 = vector.load %arg3[%c0_3, %c0_4] : memref<8x128xf32, #tpu.memory_space<vmem>>, vector<8x128xf32>
    %c0_5 = arith.constant 0 : index
    %c0_6 = arith.constant 0 : index
    %4 = vector.load %arg6[%c0_5, %c0_6] : memref<128x512xf32, #tpu.memory_space<vmem>>, vector<128x512xf32>
    %cst_7 = arith.constant dense<0.000000e+00> : vector<8x512xf32>
    %5 = tpu.matmul %3, %4, %cst_7 {dimension_numbers = #tpu.dot_dimension_numbers<[1], [0], [0], [1], [0, 0, 1, 1], [], []>} : vector<8x128xf32>, vector<128x512xf32>, vector<8x512xf32> -> vector<8x512xf32>
    %6 = arith.addf %2, %5 : vector<8x512xf32>
    %c0_8 = arith.constant 0 : index
    %c0_9 = arith.constant 0 : index
    %7 = vector.load %arg7[%c0_8, %c0_9] : memref<1x512xf32, #tpu.memory_space<vmem>>, vector<1x512xf32>
    %8 = vector.broadcast %7 : vector<1x512xf32> to vector<8x512xf32>
    %9 = arith.addf %6, %8 : vector<8x512xf32>
    %10 = vector.extract_strided_slice %9 {offsets = [0, 0], sizes = [8, 128], strides = [1, 1]} : vector<8x512xf32> to vector<8x128xf32>
    %11 = arith.negf %10 : vector<8x128xf32>
    %12 = math.exp %11 : vector<8x128xf32>
    %cst_10 = arith.constant 1.000000e+00 : f32
    %13 = vector.broadcast %cst_10 : f32 to vector<8x128xf32>
    %14 = arith.addf %13, %12 : vector<8x128xf32>
    %15 = arith.divf %13, %14 : vector<8x128xf32>
    %16 = vector.extract_strided_slice %9 {offsets = [0, 128], sizes = [8, 128], strides = [1, 1]} : vector<8x512xf32> to vector<8x128xf32>
    %17 = arith.negf %16 : vector<8x128xf32>
    %18 = math.exp %17 : vector<8x128xf32>
    %cst_11 = arith.constant 1.000000e+00 : f32
    %19 = vector.broadcast %cst_11 : f32 to vector<8x128xf32>
    %20 = arith.addf %19, %18 : vector<8x128xf32>
    %21 = arith.divf %19, %20 : vector<8x128xf32>
    %22 = vector.extract_strided_slice %9 {offsets = [0, 256], sizes = [8, 128], strides = [1, 1]} : vector<8x512xf32> to vector<8x128xf32>
    %23 = math.tanh %22 : vector<8x128xf32>
    %24 = vector.extract_strided_slice %9 {offsets = [0, 384], sizes = [8, 128], strides = [1, 1]} : vector<8x512xf32> to vector<8x128xf32>
    %25 = arith.negf %24 : vector<8x128xf32>
    %26 = math.exp %25 : vector<8x128xf32>
    %cst_12 = arith.constant 1.000000e+00 : f32
    %27 = vector.broadcast %cst_12 : f32 to vector<8x128xf32>
    %28 = arith.addf %27, %26 : vector<8x128xf32>
    %29 = arith.divf %27, %28 : vector<8x128xf32>
    %c0_13 = arith.constant 0 : index
    %c0_14 = arith.constant 0 : index
    %30 = vector.load %arg4[%c0_13, %c0_14] : memref<8x128xf32, #tpu.memory_space<vmem>>, vector<8x128xf32>
    %31 = arith.mulf %30, %21 : vector<8x128xf32>
    %32 = arith.mulf %15, %23 : vector<8x128xf32>
    %33 = arith.addf %31, %32 : vector<8x128xf32>
    %34 = math.tanh %33 : vector<8x128xf32>
    %35 = arith.mulf %29, %34 : vector<8x128xf32>
    %c0_15 = arith.constant 0 : index
    %c0_16 = arith.constant 0 : index
    %36 = vector.load %arg9[%c0_15, %c0_16] : memref<8x128xf32, #tpu.memory_space<vmem>>, vector<8x128xf32>
    tpu.vector_store %arg9[%c0_15, %c0_16], %33 {strides = array<i32>} : memref<8x128xf32, #tpu.memory_space<vmem>>, vector<8x128xf32>,
    %c0_17 = arith.constant 0 : index
    %c0_18 = arith.constant 0 : index
    %37 = vector.load %arg8[%c0_17, %c0_18] : memref<8x128xf32, #tpu.memory_space<vmem>>, vector<8x128xf32>
    tpu.vector_store %arg8[%c0_17, %c0_18], %35 {strides = array<i32>} : memref<8x128xf32, #tpu.memory_space<vmem>>, vector<8x128xf32>,
    return
  }
  func.func @transform_0(%arg0: i32, %arg1: i32) -> (i32, i32) {
    %c0_i32 = arith.constant 0 : i32
    %c0_i32_0 = arith.constant 0 : i32
    return %arg1, %c0_i32 : i32, i32
  }
  func.func @transform_1(%arg0: i32, %arg1: i32) -> (i32, i32) {
    %c0_i32 = arith.constant 0 : i32
    %c0_i32_0 = arith.constant 0 : i32
    return %arg1, %c0_i32 : i32, i32
  }
  func.func @transform_2(%arg0: i32, %arg1: i32) -> (i32, i32) {
    %c0_i32 = arith.constant 0 : i32
    return %arg1, %arg0 : i32, i32
  }
  func.func @transform_3(%arg0: i32, %arg1: i32) -> (i32, i32) {
    %c0_i32 = arith.constant 0 : i32
    %c0_i32_0 = arith.constant 0 : i32
    return %c0_i32, %arg0 : i32, i32
  }
  func.func @transform_4(%arg0: i32, %arg1: i32) -> (i32, i32) {
    %c0_i32 = arith.constant 0 : i32
    %c0_i32_0 = arith.constant 0 : i32
    return %c0_i32, %arg0 : i32, i32
  }
  func.func @transform_5(%arg0: i32, %arg1: i32) -> (i32, i32) {
    %c0_i32 = arith.constant 0 : i32
    %c0_i32_0 = arith.constant 0 : i32
    return %c0_i32, %arg0 : i32, i32
  }
  func.func @transform_6(%arg0: i32, %arg1: i32) -> (i32, i32) {
    %c0_i32 = arith.constant 0 : i32
    return %arg1, %arg0 : i32, i32
  }
  func.func @transform_7(%arg0: i32, %arg1: i32) -> (i32, i32) {
    %c0_i32 = arith.constant 0 : i32
    return %arg1, %arg0 : i32, i32
  }
}

module attributes {stable_mosaic.version = 11 : i64} {
  func.func @lstm_cell_kernel(%arg0: i32, %arg1: i32, %arg2: memref<8x128xf32, #tpu.memory_space<vmem>>, %arg3: memref<8x128xf32, #tpu.memory_space<vmem>>, %arg4: memref<8x128xf32, #tpu.memory_space<vmem>>, %arg5: memref<128x512xf32, #tpu.memory_space<vmem>>, %arg6: memref<128x512xf32, #tpu.memory_space<vmem>>, %arg7: memref<1x512xf32, #tpu.memory_space<vmem>>, %arg8: memref<8x128xf32, #tpu.memory_space<vmem>>, %arg9: memref<8x128xf32, #tpu.memory_space<vmem>>) attributes {dimension_semantics = [#tpu.dimension_semantics<parallel>, #tpu.dimension_semantics<parallel>], iteration_bounds = array<i64: 1, 1>, scalar_prefetch = 0 : i64, scratch_operands = 0 : i64, tpu.core_type = #tpu.core_type<tc>, window_params = [{transform_indices = @transform_0, window_bounds = array<i64: 8, 128>}, {transform_indices = @transform_1, window_bounds = array<i64: 8, 128>}, {transform_indices = @transform_2, window_bounds = array<i64: 8, 128>}, {transform_indices = @transform_3, window_bounds = array<i64: 128, 512>}, {transform_indices = @transform_4, window_bounds = array<i64: 128, 512>}, {transform_indices = @transform_5, window_bounds = array<i64: 1, 512>}, {transform_indices = @transform_6, window_bounds = array<i64: 8, 128>}, {transform_indices = @transform_7, window_bounds = array<i64: 8, 128>}]} {
    %c0 = arith.constant 0 : index
    %c0_0 = arith.constant 0 : index
    %0 = vector.load %arg2[%c0, %c0_0] : memref<8x128xf32, #tpu.memory_space<vmem>>, vector<8x128xf32>
    %c0_1 = arith.constant 0 : index
    %c0_2 = arith.constant 0 : index
    %1 = vector.load %arg5[%c0_1, %c0_2] : memref<128x512xf32, #tpu.memory_space<vmem>>, vector<128x512xf32>
    %cst = arith.constant dense<0.000000e+00> : vector<8x512xf32>
    %2 = tpu.matmul %0, %1, %cst {dimension_numbers = #tpu.dot_dimension_numbers<[1], [0], [0], [1], [0, 0, 1, 1], [], []>} : vector<8x128xf32>, vector<128x512xf32>, vector<8x512xf32> -> vector<8x512xf32>
    %c0_3 = arith.constant 0 : index
    %c0_4 = arith.constant 0 : index
    %3 = vector.load %arg3[%c0_3, %c0_4] : memref<8x128xf32, #tpu.memory_space<vmem>>, vector<8x128xf32>
    %c0_5 = arith.constant 0 : index
    %c0_6 = arith.constant 0 : index
    %4 = vector.load %arg6[%c0_5, %c0_6] : memref<128x512xf32, #tpu.memory_space<vmem>>, vector<128x512xf32>
    %cst_7 = arith.constant dense<0.000000e+00> : vector<8x512xf32>
    %5 = tpu.matmul %3, %4, %cst_7 {dimension_numbers = #tpu.dot_dimension_numbers<[1], [0], [0], [1], [0, 0, 1, 1], [], []>} : vector<8x128xf32>, vector<128x512xf32>, vector<8x512xf32> -> vector<8x512xf32>
    %6 = arith.addf %2, %5 : vector<8x512xf32>
    %c0_8 = arith.constant 0 : index
    %c0_9 = arith.constant 0 : index
    %7 = vector.load %arg7[%c0_8, %c0_9] : memref<1x512xf32, #tpu.memory_space<vmem>>, vector<1x512xf32>
    %8 = vector.broadcast %7 : vector<1x512xf32> to vector<8x512xf32>
    %9 = arith.addf %6, %8 : vector<8x512xf32>
    %10 = vector.extract_strided_slice %9 {offsets = [0, 0], sizes = [8, 128], strides = [1, 1]} : vector<8x512xf32> to vector<8x128xf32>
    %11 = arith.negf %10 : vector<8x128xf32>
    %12 = math.exp %11 : vector<8x128xf32>
    %cst_10 = arith.constant 1.000000e+00 : f32
    %13 = vector.broadcast %cst_10 : f32 to vector<8x128xf32>
    %14 = arith.addf %13, %12 : vector<8x128xf32>
    %15 = arith.divf %13, %14 : vector<8x128xf32>
    %16 = vector.extract_strided_slice %9 {offsets = [0, 128], sizes = [8, 128], strides = [1, 1]} : vector<8x512xf32> to vector<8x128xf32>
    %17 = arith.negf %16 : vector<8x128xf32>
    %18 = math.exp %17 : vector<8x128xf32>
    %cst_11 = arith.constant 1.000000e+00 : f32
    %19 = vector.broadcast %cst_11 : f32 to vector<8x128xf32>
    %20 = arith.addf %19, %18 : vector<8x128xf32>
    %21 = arith.divf %19, %20 : vector<8x128xf32>
    %22 = vector.extract_strided_slice %9 {offsets = [0, 256], sizes = [8, 128], strides = [1, 1]} : vector<8x512xf32> to vector<8x128xf32>
    %23 = math.tanh %22 : vector<8x128xf32>
    %24 = vector.extract_strided_slice %9 {offsets = [0, 384], sizes = [8, 128], strides = [1, 1]} : vector<8x512xf32> to vector<8x128xf32>
    %25 = arith.negf %24 : vector<8x128xf32>
    %26 = math.exp %25 : vector<8x128xf32>
    %cst_12 = arith.constant 1.000000e+00 : f32
    %27 = vector.broadcast %cst_12 : f32 to vector<8x128xf32>
    %28 = arith.addf %27, %26 : vector<8x128xf32>
    %29 = arith.divf %27, %28 : vector<8x128xf32>
    %c0_13 = arith.constant 0 : index
    %c0_14 = arith.constant 0 : index
    %30 = vector.load %arg4[%c0_13, %c0_14] : memref<8x128xf32, #tpu.memory_space<vmem>>, vector<8x128xf32>
    %31 = arith.mulf %30, %21 : vector<8x128xf32>
    %32 = arith.mulf %15, %23 : vector<8x128xf32>
    %33 = arith.addf %31, %32 : vector<8x128xf32>
    %34 = math.tanh %33 : vector<8x128xf32>
    %35 = arith.mulf %29, %34 : vector<8x128xf32>
    %c0_15 = arith.constant 0 : index
    %c0_16 = arith.constant 0 : index
    %36 = vector.load %arg9[%c0_15, %c0_16] : memref<8x128xf32, #tpu.memory_space<vmem>>, vector<8x128xf32>
    tpu.vector_store %arg9[%c0_15, %c0_16], %33 {strides = array<i32>} : memref<8x128xf32, #tpu.memory_space<vmem>>, vector<8x128xf32>,
    %c0_17 = arith.constant 0 : index
    %c0_18 = arith.constant 0 : index
    %37 = vector.load %arg8[%c0_17, %c0_18] : memref<8x128xf32, #tpu.memory_space<vmem>>, vector<8x128xf32>
    tpu.vector_store %arg8[%c0_17, %c0_18], %35 {strides = array<i32>} : memref<8x128xf32, #tpu.memory_space<vmem>>, vector<8x128xf32>,
    return
  }
  func.func @transform_0(%arg0: i32, %arg1: i32) -> (i32, i32) {
    %c0_i32 = arith.constant 0 : i32
    %c0_i32_0 = arith.constant 0 : i32
    return %arg1, %c0_i32 : i32, i32
  }
  func.func @transform_1(%arg0: i32, %arg1: i32) -> (i32, i32) {
    %c0_i32 = arith.constant 0 : i32
    %c0_i32_0 = arith.constant 0 : i32
    return %arg1, %c0_i32 : i32, i32
  }
  func.func @transform_2(%arg0: i32, %arg1: i32) -> (i32, i32) {
    %c0_i32 = arith.constant 0 : i32
    return %arg1, %arg0 : i32, i32
  }
  func.func @transform_3(%arg0: i32, %arg1: i32) -> (i32, i32) {
    %c0_i32 = arith.constant 0 : i32
    %c0_i32_0 = arith.constant 0 : i32
    return %c0_i32, %arg0 : i32, i32
  }
  func.func @transform_4(%arg0: i32, %arg1: i32) -> (i32, i32) {
    %c0_i32 = arith.constant 0 : i32
    %c0_i32_0 = arith.constant 0 : i32
    return %c0_i32, %arg0 : i32, i32
  }
  func.func @transform_5(%arg0: i32, %arg1: i32) -> (i32, i32) {
    %c0_i32 = arith.constant 0 : i32
    %c0_i32_0 = arith.constant 0 : i32
    return %c0_i32, %arg0 : i32, i32
  }
  func.func @transform_6(%arg0: i32, %arg1: i32) -> (i32, i32) {
    %c0_i32 = arith.constant 0 : i32
    return %arg1, %arg0 : i32, i32
  }
  func.func @transform_7(%arg0: i32, %arg1: i32) -> (i32, i32) {
    %c0_i32 = arith.constant 0 : i32
    return %arg1, %arg0 : i32, i32
  }
}

</mosaic_0001>

<llo_original>
// kernel: _lstm_cell_step.1
$region0: #{_lstm_cell_step.1}
  #allocation0 [shape = 'u32[]', space=smem, size = 0x4, offset = 0x4, fixed_abs, tag = 'smem constant byte address 0x4 - core index']
  #allocation1 [shape = 'u32[144,128]{1,0:T(1,128)}', space=vmem, size = 0x12000, scoped, tag = 'internal scratch']
  %s0 = inlined_call_operand.hbm [shape: f32[8,128], index: 0, kind: input, shape index: {}]
  %s1 = inlined_call_operand.hbm [shape: f32[8,128], index: 1, kind: input, shape index: {}]
  %s2 = inlined_call_operand.hbm [shape: f32[8,128], index: 2, kind: input, shape index: {}]
  %s3 = inlined_call_operand.hbm [shape: f32[128,512], index: 3, kind: input, shape index: {}]
  %s4 = inlined_call_operand.hbm [shape: f32[128,512], index: 4, kind: input, shape index: {}]
  %s5 = inlined_call_operand.hbm [shape: f32[1,512], index: 5, kind: input, shape index: {}]
  %s6 = inlined_call_operand.hbm [shape: f32[8,128], index: 6, kind: output, shape index: {0}]
  %s7 = inlined_call_operand.hbm [shape: f32[8,128], index: 7, kind: output, shape index: {1}]
  %8 = xla_tuple %s6, %s7
  %s9 = sld [smem:[#allocation0]]
  $region66: #{_lstm_cell_step.1} parent=0
    _
  %s11 = ssub.s32 1, %s9
  %s12 = scalar_select 0, %s11, %s9
  $region1: #{_lstm_cell_step.1} parent=0
    #allocation2 [shape = 'u8[4096]{0}', space=vmem, size = 0x1000, scoped, tag = 'input window, operand 0, single buffered']
    #allocation3 [shape = 's32[1]{0}', space=sflag, size = 0x4, scoped, tag = 'scoped memory for _lstm_cell_step.1']
    #allocation4 [shape = 's32[1]{0}', space=sflag, size = 0x4, scoped, tag = 'scoped memory for _lstm_cell_step.1']
    #allocation5 [shape = 'u8[4096]{0}', space=vmem, size = 0x1000, scoped, tag = 'input window, operand 1, single buffered']
    #allocation6 [shape = 's32[1]{0}', space=sflag, size = 0x4, scoped, tag = 'scoped memory for _lstm_cell_step.1']
    #allocation7 [shape = 'u8[4096]{0}', space=vmem, size = 0x1000, scoped, tag = 'input window, operand 2, single buffered']
    #allocation8 [shape = 'u8[262144]{0}', space=vmem, size = 0x40000, scoped, tag = 'input window, operand 3, single buffered']
    #allocation9 [shape = 's32[1]{0}', space=sflag, size = 0x4, scoped, tag = 'scoped memory for _lstm_cell_step.1']
    #allocation10 [shape = 'u8[262144]{0}', space=vmem, size = 0x40000, scoped, tag = 'input window, operand 4, single buffered']
    #allocation11 [shape = 'u8[2048]{0}', space=vmem, size = 0x800, scoped, tag = 'input window, operand 5, single buffered']
    #allocation12 [shape = 's32[1]{0}', space=sflag, size = 0x4, scoped, tag = 'scoped memory for _lstm_cell_step.1']
    #allocation13 [shape = 'u8[4096]{0}', space=vmem, size = 0x1000, scoped, tag = 'output window, operand 0, single buffered']
    #allocation14 [shape = 'u8[4096]{0}', space=vmem, size = 0x1000, scoped, tag = 'output window, operand 1, single buffered']
    #allocation15 [shape = 's32[1]{0}', space=sflag, size = 0x4, scoped, tag = 'scoped memory for _lstm_cell_step.1']
    %13 = vsyncpa [#allocation3], 0
    %14 = vsyncpa [#allocation6], 0
    %15 = vsyncpa [#allocation9], 0
    %16 = vsyncpa [#allocation12], 0
    %17 = vsyncpa [#allocation4], 0
    %18 = vsyncpa [#allocation15], 0
    // Predicated region
    $region2: #{_lstm_cell_step.1} parent=1 // pred_check
      _
    $region3: #{_lstm_cell_step.1} parent=1 // pred_check_branch
      %20 = sbr.rel (0) target = $region5
    $region4: #{_lstm_cell_step.1} parent=1 // pred_region
      %s22 = ssub.s32 128, 128
      %23 = vsyncadd [#allocation3], %s22
      %s25 = sshll.u32 [#allocation2], 4
      %s26 = int_to_ptr.vmem [resolvable:$true] %s25
      %28 = dma.hbm_to_vmem [thread:$0]  %s0, 128, %s26, [#allocation3]
    $region5: #{_lstm_cell_step.1} parent=1 // pred_fallthru
      _
    // Predicated region
    $region6: #{_lstm_cell_step.1} parent=1 // pred_check
      _
    $region7: #{_lstm_cell_step.1} parent=1 // pred_check_branch
      %30 = sbr.rel (0) target = $region9
    $region8: #{_lstm_cell_step.1} parent=1 // pred_region
      %s32 = ssub.s32 128, 128
      %33 = vsyncadd [#allocation6], %s32
      %s35 = sshll.u32 [#allocation5], 4
      %s36 = int_to_ptr.vmem [resolvable:$true] %s35
      %38 = dma.hbm_to_vmem [thread:$0]  %s1, 128, %s36, [#allocation6]
    $region9: #{_lstm_cell_step.1} parent=1 // pred_fallthru
      _
    // Predicated region
    $region10: #{_lstm_cell_step.1} parent=1 // pred_check
      _
    $region11: #{_lstm_cell_step.1} parent=1 // pred_check_branch
      %40 = sbr.rel (0) target = $region13
    $region12: #{_lstm_cell_step.1} parent=1 // pred_region
      %s42 = ssub.s32 128, 128
      %43 = vsyncadd [#allocation6], %s42
      %s45 = sshll.u32 [#allocation7], 4
      %s46 = int_to_ptr.vmem [resolvable:$true] %s45
      %48 = dma.hbm_to_vmem [thread:$0]  %s2, 128, %s46, [#allocation6]
    $region13: #{_lstm_cell_step.1} parent=1 // pred_fallthru
      _
    // Predicated region
    $region14: #{_lstm_cell_step.1} parent=1 // pred_check
      _
    $region15: #{_lstm_cell_step.1} parent=1 // pred_check_branch
      %50 = sbr.rel (0) target = $region17
    $region16: #{_lstm_cell_step.1} parent=1 // pred_region
      %s52 = ssub.s32 8192, 8192
      %53 = vsyncadd [#allocation9], %s52
      %s54 = sshll.u32 [#allocation8], 4
      %s55 = int_to_ptr.vmem [resolvable:$true] %s54
      %60 = dma.hbm_to_vmem [thread:$0]  %s3, 8192, %s55, [#allocation9], 512, 512, 32
    $region17: #{_lstm_cell_step.1} parent=1 // pred_fallthru
      _
    // Predicated region
    $region18: #{_lstm_cell_step.1} parent=1 // pred_check
      _
    $region19: #{_lstm_cell_step.1} parent=1 // pred_check_branch
      %62 = sbr.rel (0) target = $region21
    $region20: #{_lstm_cell_step.1} parent=1 // pred_region
      %s64 = ssub.s32 8192, 8192
      %65 = vsyncadd [#allocation9], %s64
      %s66 = sshll.u32 [#allocation10], 4
      %s67 = int_to_ptr.vmem [resolvable:$true] %s66
      %72 = dma.hbm_to_vmem [thread:$0]  %s4, 8192, %s67, [#allocation9], 512, 512, 32
    $region21: #{_lstm_cell_step.1} parent=1 // pred_fallthru
      _
    // Predicated region
    $region22: #{_lstm_cell_step.1} parent=1 // pred_check
      _
    $region23: #{_lstm_cell_step.1} parent=1 // pred_check_branch
      %74 = sbr.rel (0) target = $region25
    $region24: #{_lstm_cell_step.1} parent=1 // pred_region
      %s76 = ssub.s32 64, 64
      %77 = vsyncadd [#allocation12], %s76
      %s79 = sshll.u32 [#allocation11], 4
      %s80 = int_to_ptr.vmem [resolvable:$true] %s79
      %82 = dma.hbm_to_vmem [thread:$0]  %s5, 64, %s80, [#allocation12]
    $region25: #{_lstm_cell_step.1} parent=1 // pred_fallthru
      _
    // Predicated region
    $region26: #{_lstm_cell_step.1} parent=1 // pred_check
      _
    $region27: #{_lstm_cell_step.1} parent=1 // pred_check_branch
      %84 = sbr.rel (0) target = $region29
    $region28: #{_lstm_cell_step.1} parent=1 // pred_region
      %85 = dma.done [#allocation3], 128
    $region29: #{_lstm_cell_step.1} parent=1 // pred_fallthru
      _
    // Predicated region
    $region30: #{_lstm_cell_step.1} parent=1 // pred_check
      _
    $region31: #{_lstm_cell_step.1} parent=1 // pred_check_branch
      %87 = sbr.rel (0) target = $region33
    $region32: #{_lstm_cell_step.1} parent=1 // pred_region
      %88 = dma.done [#allocation6], 128
    $region33: #{_lstm_cell_step.1} parent=1 // pred_fallthru
      _
    // Predicated region
    $region34: #{_lstm_cell_step.1} parent=1 // pred_check
      _
    $region35: #{_lstm_cell_step.1} parent=1 // pred_check_branch
      %90 = sbr.rel (0) target = $region37
    $region36: #{_lstm_cell_step.1} parent=1 // pred_region
      %91 = dma.done [#allocation6], 128
    $region37: #{_lstm_cell_step.1} parent=1 // pred_fallthru
      _
    // Predicated region
    $region38: #{_lstm_cell_step.1} parent=1 // pred_check
      _
    $region39: #{_lstm_cell_step.1} parent=1 // pred_check_branch
      %93 = sbr.rel (0) target = $region41
    $region40: #{_lstm_cell_step.1} parent=1 // pred_region
      %94 = dma.done [#allocation9], 8192
    $region41: #{_lstm_cell_step.1} parent=1 // pred_fallthru
      _
    // Predicated region
    $region42: #{_lstm_cell_step.1} parent=1 // pred_check
      _
    $region43: #{_lstm_cell_step.1} parent=1 // pred_check_branch
      %96 = sbr.rel (0) target = $region45
    $region44: #{_lstm_cell_step.1} parent=1 // pred_region
      %97 = dma.done [#allocation9], 8192
    $region45: #{_lstm_cell_step.1} parent=1 // pred_fallthru
      _
    // Predicated region
    $region46: #{_lstm_cell_step.1} parent=1 // pred_check
      _
    $region47: #{_lstm_cell_step.1} parent=1 // pred_check_branch
      %99 = sbr.rel (0) target = $region49
    $region48: #{_lstm_cell_step.1} parent=1 // pred_region
      %100 = dma.done [#allocation12], 64
    $region49: #{_lstm_cell_step.1} parent=1 // pred_fallthru
      _
    %v101 = vld [vmem:[#allocation2] sm:$0xff]
    %v102 = vld [vmem:[#allocation8] sm:$0xff]
    %v103 = vld [vmem:[#allocation8 + $0x8] sm:$0xff]
    %v104 = vld [vmem:[#allocation8 + $0x10] sm:$0xff]
    %v105 = vld [vmem:[#allocation8 + $0x18] sm:$0xff]
    %v106 = vld [vmem:[#allocation8 + $0x20] sm:$0xff]
    %v107 = vld [vmem:[#allocation8 + $0x28] sm:$0xff]
    %v108 = vld [vmem:[#allocation8 + $0x30] sm:$0xff]
    %v109 = vld [vmem:[#allocation8 + $0x38] sm:$0xff]
    %v110 = vld [vmem:[#allocation8 + $0x40] sm:$0xff]
    %v111 = vld [vmem:[#allocation8 + $0x48] sm:$0xff]
    %v112 = vld [vmem:[#allocation8 + $0x50] sm:$0xff]
    %v113 = vld [vmem:[#allocation8 + $0x58] sm:$0xff]
    %v114 = vld [vmem:[#allocation8 + $0x60] sm:$0xff]
    %v115 = vld [vmem:[#allocation8 + $0x68] sm:$0xff]
    %v116 = vld [vmem:[#allocation8 + $0x70] sm:$0xff]
    %v117 = vld [vmem:[#allocation8 + $0x78] sm:$0xff]
    %v118 = vld [vmem:[#allocation8 + $0x80] sm:$0xff]
    %v119 = vld [vmem:[#allocation8 + $0x88] sm:$0xff]
    %v120 = vld [vmem:[#allocation8 + $0x90] sm:$0xff]
    %v121 = vld [vmem:[#allocation8 + $0x98] sm:$0xff]
    %v122 = vld [vmem:[#allocation8 + $0xa0] sm:$0xff]
    %v123 = vld [vmem:[#allocation8 + $0xa8] sm:$0xff]
    %v124 = vld [vmem:[#allocation8 + $0xb0] sm:$0xff]
    %v125 = vld [vmem:[#allocation8 + $0xb8] sm:$0xff]
    %v126 = vld [vmem:[#allocation8 + $0xc0] sm:$0xff]
    %v127 = vld [vmem:[#allocation8 + $0xc8] sm:$0xff]
    %v128 = vld [vmem:[#allocation8 + $0xd0] sm:$0xff]
    %v129 = vld [vmem:[#allocation8 + $0xd8] sm:$0xff]
    %v130 = vld [vmem:[#allocation8 + $0xe0] sm:$0xff]
    %v131 = vld [vmem:[#allocation8 + $0xe8] sm:$0xff]
    %v132 = vld [vmem:[#allocation8 + $0xf0] sm:$0xff]
    %v133 = vld [vmem:[#allocation8 + $0xf8] sm:$0xff]
    %v134 = vld [vmem:[#allocation8 + $0x100] sm:$0xff]
    %v135 = vld [vmem:[#allocation8 + $0x108] sm:$0xff]
    %v136 = vld [vmem:[#allocation8 + $0x110] sm:$0xff]
    %v137 = vld [vmem:[#allocation8 + $0x118] sm:$0xff]
    %v138 = vld [vmem:[#allocation8 + $0x120] sm:$0xff]
    %v139 = vld [vmem:[#allocation8 + $0x128] sm:$0xff]
    %v140 = vld [vmem:[#allocation8 + $0x130] sm:$0xff]
    %v141 = vld [vmem:[#allocation8 + $0x138] sm:$0xff]
    %v142 = vld [vmem:[#allocation8 + $0x140] sm:$0xff]
    %v143 = vld [vmem:[#allocation8 + $0x148] sm:$0xff]
    %v144 = vld [vmem:[#allocation8 + $0x150] sm:$0xff]
    %v145 = vld [vmem:[#allocation8 + $0x158] sm:$0xff]
    %v146 = vld [vmem:[#allocation8 + $0x160] sm:$0xff]
    %v147 = vld [vmem:[#allocation8 + $0x168] sm:$0xff]
    %v148 = vld [vmem:[#allocation8 + $0x170] sm:$0xff]
    %v149 = vld [vmem:[#allocation8 + $0x178] sm:$0xff]
    %v150 = vld [vmem:[#allocation8 + $0x180] sm:$0xff]
    %v151 = vld [vmem:[#allocation8 + $0x188] sm:$0xff]
    %v152 = vld [vmem:[#allocation8 + $0x190] sm:$0xff]
    %v153 = vld [vmem:[#allocation8 + $0x198] sm:$0xff]
    %v154 = vld [vmem:[#allocation8 + $0x1a0] sm:$0xff]
    %v155 = vld [vmem:[#allocation8 + $0x1a8] sm:$0xff]
    %v156 = vld [vmem:[#allocation8 + $0x1b0] sm:$0xff]
    %v157 = vld [vmem:[#allocation8 + $0x1b8] sm:$0xff]
    %v158 = vld [vmem:[#allocation8 + $0x1c0] sm:$0xff]
    %v159 = vld [vmem:[#allocation8 + $0x1c8] sm:$0xff]
    %v160 = vld [vmem:[#allocation8 + $0x1d0] sm:$0xff]
    %v161 = vld [vmem:[#allocation8 + $0x1d8] sm:$0xff]
    %v162 = vld [vmem:[#allocation8 + $0x1e0] sm:$0xff]
    %v163 = vld [vmem:[#allocation8 + $0x1e8] sm:$0xff]
    %v164 = vld [vmem:[#allocation8 + $0x1f0] sm:$0xff]
    %v165 = vld [vmem:[#allocation8 + $0x1f8] sm:$0xff]
    %v166 = vld [vmem:[#allocation5] sm:$0xff]
    %v167 = vld [vmem:[#allocation10] sm:$0xff]
    %v168 = vld [vmem:[#allocation10 + $0x8] sm:$0xff]
    %v169 = vld [vmem:[#allocation10 + $0x10] sm:$0xff]
    %v170 = vld [vmem:[#allocation10 + $0x18] sm:$0xff]
    %v171 = vld [vmem:[#allocation10 + $0x20] sm:$0xff]
    %v172 = vld [vmem:[#allocation10 + $0x28] sm:$0xff]
    %v173 = vld [vmem:[#allocation10 + $0x30] sm:$0xff]
    %v174 = vld [vmem:[#allocation10 + $0x38] sm:$0xff]
    %v175 = vld [vmem:[#allocation10 + $0x40] sm:$0xff]
    %v176 = vld [vmem:[#allocation10 + $0x48] sm:$0xff]
    %v177 = vld [vmem:[#allocation10 + $0x50] sm:$0xff]
    %v178 = vld [vmem:[#allocation10 + $0x58] sm:$0xff]
    %v179 = vld [vmem:[#allocation10 + $0x60] sm:$0xff]
    %v180 = vld [vmem:[#allocation10 + $0x68] sm:$0xff]
    %v181 = vld [vmem:[#allocation10 + $0x70] sm:$0xff]
    %v182 = vld [vmem:[#allocation10 + $0x78] sm:$0xff]
    %v183 = vld [vmem:[#allocation10 + $0x80] sm:$0xff]
    %v184 = vld [vmem:[#allocation10 + $0x88] sm:$0xff]
    %v185 = vld [vmem:[#allocation10 + $0x90] sm:$0xff]
    %v186 = vld [vmem:[#allocation10 + $0x98] sm:$0xff]
    %v187 = vld [vmem:[#allocation10 + $0xa0] sm:$0xff]
    %v188 = vld [vmem:[#allocation10 + $0xa8] sm:$0xff]
    %v189 = vld [vmem:[#allocation10 + $0xb0] sm:$0xff]
    %v190 = vld [vmem:[#allocation10 + $0xb8] sm:$0xff]
    %v191 = vld [vmem:[#allocation10 + $0xc0] sm:$0xff]
    %v192 = vld [vmem:[#allocation10 + $0xc8] sm:$0xff]
    %v193 = vld [vmem:[#allocation10 + $0xd0] sm:$0xff]
    %v194 = vld [vmem:[#allocation10 + $0xd8] sm:$0xff]
    %v195 = vld [vmem:[#allocation10 + $0xe0] sm:$0xff]
    %v196 = vld [vmem:[#allocation10 + $0xe8] sm:$0xff]
    %v197 = vld [vmem:[#allocation10 + $0xf0] sm:$0xff]
    %v198 = vld [vmem:[#allocation10 + $0xf8] sm:$0xff]
    %v199 = vld [vmem:[#allocation10 + $0x100] sm:$0xff]
    %v200 = vld [vmem:[#allocation10 + $0x108] sm:$0xff]
    %v201 = vld [vmem:[#allocation10 + $0x110] sm:$0xff]
    %v202 = vld [vmem:[#allocation10 + $0x118] sm:$0xff]
    %v203 = vld [vmem:[#allocation10 + $0x120] sm:$0xff]
    %v204 = vld [vmem:[#allocation10 + $0x128] sm:$0xff]
    %v205 = vld [vmem:[#allocation10 + $0x130] sm:$0xff]
    %v206 = vld [vmem:[#allocation10 + $0x138] sm:$0xff]
    %v207 = vld [vmem:[#allocation10 + $0x140] sm:$0xff]
    %v208 = vld [vmem:[#allocation10 + $0x148] sm:$0xff]
    %v209 = vld [vmem:[#allocation10 + $0x150] sm:$0xff]
    %v210 = vld [vmem:[#allocation10 + $0x158] sm:$0xff]
    %v211 = vld [vmem:[#allocation10 + $0x160] sm:$0xff]
    %v212 = vld [vmem:[#allocation10 + $0x168] sm:$0xff]
    %v213 = vld [vmem:[#allocation10 + $0x170] sm:$0xff]
    %v214 = vld [vmem:[#allocation10 + $0x178] sm:$0xff]
    %v215 = vld [vmem:[#allocation10 + $0x180] sm:$0xff]
    %v216 = vld [vmem:[#allocation10 + $0x188] sm:$0xff]
    %v217 = vld [vmem:[#allocation10 + $0x190] sm:$0xff]
    %v218 = vld [vmem:[#allocation10 + $0x198] sm:$0xff]
    %v219 = vld [vmem:[#allocation10 + $0x1a0] sm:$0xff]
    %v220 = vld [vmem:[#allocation10 + $0x1a8] sm:$0xff]
    %v221 = vld [vmem:[#allocation10 + $0x1b0] sm:$0xff]
    %v222 = vld [vmem:[#allocation10 + $0x1b8] sm:$0xff]
    %v223 = vld [vmem:[#allocation10 + $0x1c0] sm:$0xff]
    %v224 = vld [vmem:[#allocation10 + $0x1c8] sm:$0xff]
    %v225 = vld [vmem:[#allocation10 + $0x1d0] sm:$0xff]
    %v226 = vld [vmem:[#allocation10 + $0x1d8] sm:$0xff]
    %v227 = vld [vmem:[#allocation10 + $0x1e0] sm:$0xff]
    %v228 = vld [vmem:[#allocation10 + $0x1e8] sm:$0xff]
    %v229 = vld [vmem:[#allocation10 + $0x1f0] sm:$0xff]
    %v230 = vld [vmem:[#allocation10 + $0x1f8] sm:$0xff]
    %231 = vmatprep.subr.mxu0 %v168
    %232 = vmatpush1.msra.mxu0 %v167
    %233 = vmatprep.subr.mxu0 %v172
    %234 = vmatpush1.msra.mxu0 %v171
    %235 = vmatprep.subr.mxu0 %v176
    %236 = vmatpush1.msra.mxu0 %v175
    %237 = vmatprep.subr.mxu0 %v180
    %238 = vmatpush1.msra.mxu0 %v179
    %239 = vmatprep.subr.mxu0 %v184
    %240 = vmatpush1.msra.mxu0 %v183
    %241 = vmatprep.subr.mxu0 %v188
    %242 = vmatpush1.msra.mxu0 %v187
    %243 = vmatprep.subr.mxu0 %v192
    %244 = vmatpush1.msra.mxu0 %v191
    %245 = vmatprep.subr.mxu0 %v196
    %246 = vmatpush1.msra.mxu0 %v195
    %247 = vmatprep.subr.mxu0 %v200
    %248 = vmatpush1.msra.mxu0 %v199
    %249 = vmatprep.subr.mxu0 %v204
    %250 = vmatpush1.msra.mxu0 %v203
    %251 = vmatprep.subr.mxu0 %v208
    %252 = vmatpush1.msra.mxu0 %v207
    %253 = vmatprep.subr.mxu0 %v212
    %254 = vmatpush1.msra.mxu0 %v211
    %255 = vmatprep.subr.mxu0 %v216
    %256 = vmatpush1.msra.mxu0 %v215
    %257 = vmatprep.subr.mxu0 %v220
    %258 = vmatpush1.msra.mxu0 %v219
    %259 = vmatprep.subr.mxu0 %v224
    %260 = vmatpush1.msra.mxu0 %v223
    %261 = vmatprep.subr.mxu0 %v228
    %262 = vmatpush1.msra.mxu0 %v227
    %263 = vmatprep.subr.mxu0 0.0
    %264 = vmatpush1.msra.mxu0 0.0
    %265 = vmatprep.subr.mxu0 0.0
    %266 = vmatpush1.msra.mxu0 0.0
    %267 = vmatprep.subr.mxu0 0.0
    %268 = vmatpush1.msra.mxu0 0.0
    %269 = vmatprep.subr.mxu0 0.0
    %270 = vmatpush1.msra.mxu0 0.0
    %271 = vmatprep.subr.mxu0 0.0
    %272 = vmatpush1.msra.mxu0 0.0
    %273 = vmatprep.subr.mxu0 0.0
    %274 = vmatpush1.msra.mxu0 0.0
    %275 = vmatprep.subr.mxu0 0.0
    %276 = vmatpush1.msra.mxu0 0.0
    %277 = vmatprep.subr.mxu0 0.0
    %278 = vmatpush1.msra.mxu0 0.0
    %279 = vmatprep.subr.mxu0 0.0
    %280 = vmatpush1.msra.mxu0 0.0
    %281 = vmatprep.subr.mxu0 0.0
    %282 = vmatpush1.msra.mxu0 0.0
    %283 = vmatprep.subr.mxu0 0.0
    %284 = vmatpush1.msra.mxu0 0.0
    %285 = vmatprep.subr.mxu0 0.0
    %286 = vmatpush1.msra.mxu0 0.0
    %287 = vmatprep.subr.mxu0 0.0
    %288 = vmatpush1.msra.mxu0 0.0
    %289 = vmatprep.subr.mxu0 0.0
    %290 = vmatpush1.msra.mxu0 0.0
    %291 = vmatprep.subr.mxu0 0.0
    %292 = vmatpush1.msra.mxu0 0.0
    %293 = vmatprep.subr.mxu0 0.0
    %294 = vmatpush1.msra.mxu0 0.0
    %295 = vmatprep.mubr.f32.mxu0 0.0
    %296 = vmatmul.mubr.f32.gmra.mrb[0].mxu0 %v166
    %v297 = vpop.f32.mrb[0].mxu0
    %v298 = vadd.f32 0.0, %v297
    %v299 = vpop.f32.mrb[0].mxu0
    %v300 = vadd.f32 0.0, %v299
    %301 = vdwg.mxu0
    %302 = vmatprep.subr.mxu0 %v170
    %303 = vmatpush1.msra.mxu0 %v169
    %304 = vmatprep.subr.mxu0 %v174
    %305 = vmatpush1.msra.mxu0 %v173
    %306 = vmatprep.subr.mxu0 %v178
    %307 = vmatpush1.msra.mxu0 %v177
    %308 = vmatprep.subr.mxu0 %v182
    %309 = vmatpush1.msra.mxu0 %v181
    %310 = vmatprep.subr.mxu0 %v186
    %311 = vmatpush1.msra.mxu0 %v185
    %312 = vmatprep.subr.mxu0 %v190
    %313 = vmatpush1.msra.mxu0 %v189
    %314 = vmatprep.subr.mxu0 %v194
    %315 = vmatpush1.msra.mxu0 %v193
    %316 = vmatprep.subr.mxu0 %v198
    %317 = vmatpush1.msra.mxu0 %v197
    %318 = vmatprep.subr.mxu0 %v202
    %319 = vmatpush1.msra.mxu0 %v201
    %320 = vmatprep.subr.mxu0 %v206
    %321 = vmatpush1.msra.mxu0 %v205
    %322 = vmatprep.subr.mxu0 %v210
    %323 = vmatpush1.msra.mxu0 %v209
    %324 = vmatprep.subr.mxu0 %v214
    %325 = vmatpush1.msra.mxu0 %v213
    %326 = vmatprep.subr.mxu0 %v218
    %327 = vmatpush1.msra.mxu0 %v217
    %328 = vmatprep.subr.mxu0 %v222
    %329 = vmatpush1.msra.mxu0 %v221
    %330 = vmatprep.subr.mxu0 %v226
    %331 = vmatpush1.msra.mxu0 %v225
    %332 = vmatprep.subr.mxu0 %v230
    %333 = vmatpush1.msra.mxu0 %v229
    %334 = vmatprep.subr.mxu0 0.0
    %335 = vmatpush1.msra.mxu0 0.0
    %336 = vmatprep.subr.mxu0 0.0
    %337 = vmatpush1.msra.mxu0 0.0
    %338 = vmatprep.subr.mxu0 0.0
    %339 = vmatpush1.msra.mxu0 0.0
    %340 = vmatprep.subr.mxu0 0.0
    %341 = vmatpush1.msra.mxu0 0.0
    %342 = vmatprep.subr.mxu0 0.0
    %343 = vmatpush1.msra.mxu0 0.0
    %344 = vmatprep.subr.mxu0 0.0
    %345 = vmatpush1.msra.mxu0 0.0
    %346 = vmatprep.subr.mxu0 0.0
    %347 = vmatpush1.msra.mxu0 0.0
    %348 = vmatprep.subr.mxu0 0.0
    %349 = vmatpush1.msra.mxu0 0.0
    %350 = vmatprep.subr.mxu0 0.0
    %351 = vmatpush1.msra.mxu0 0.0
    %352 = vmatprep.subr.mxu0 0.0
    %353 = vmatpush1.msra.mxu0 0.0
    %354 = vmatprep.subr.mxu0 0.0
    %355 = vmatpush1.msra.mxu0 0.0
    %356 = vmatprep.subr.mxu0 0.0
    %357 = vmatpush1.msra.mxu0 0.0
    %358 = vmatprep.subr.mxu0 0.0
    %359 = vmatpush1.msra.mxu0 0.0
    %360 = vmatprep.subr.mxu0 0.0
    %361 = vmatpush1.msra.mxu0 0.0
    %362 = vmatprep.subr.mxu0 0.0
    %363 = vmatpush1.msra.mxu0 0.0
    %364 = vmatprep.subr.mxu0 0.0
    %365 = vmatpush1.msra.mxu0 0.0
    %366 = vmatprep.mubr.f32.mxu0 0.0
    %367 = vmatmul.mubr.f32.gmra.mrb[0].mxu0 %v166
    %v368 = vpop.f32.mrb[0].mxu0
    %v369 = vadd.f32 0.0, %v368
    %v370 = vpop.f32.mrb[0].mxu0
    %v371 = vadd.f32 0.0, %v370
    %372 = vdwg.mxu0
    %373 = vmatprep.subr.mxu0 %v103
    %374 = vmatpush1.msra.mxu0 %v102
    %375 = vmatprep.subr.mxu0 %v107
    %376 = vmatpush1.msra.mxu0 %v106
    %377 = vmatprep.subr.mxu0 %v111
    %378 = vmatpush1.msra.mxu0 %v110
    %379 = vmatprep.subr.mxu0 %v115
    %380 = vmatpush1.msra.mxu0 %v114
    %381 = vmatprep.subr.mxu0 %v119
    %382 = vmatpush1.msra.mxu0 %v118
    %383 = vmatprep.subr.mxu0 %v123
    %384 = vmatpush1.msra.mxu0 %v122
    %385 = vmatprep.subr.mxu0 %v127
    %386 = vmatpush1.msra.mxu0 %v126
    %387 = vmatprep.subr.mxu0 %v131
    %388 = vmatpush1.msra.mxu0 %v130
    %389 = vmatprep.subr.mxu0 %v135
    %390 = vmatpush1.msra.mxu0 %v134
    %391 = vmatprep.subr.mxu0 %v139
    %392 = vmatpush1.msra.mxu0 %v138
    %393 = vmatprep.subr.mxu0 %v143
    %394 = vmatpush1.msra.mxu0 %v142
    %395 = vmatprep.subr.mxu0 %v147
    %396 = vmatpush1.msra.mxu0 %v146
    %397 = vmatprep.subr.mxu0 %v151
    %398 = vmatpush1.msra.mxu0 %v150
    %399 = vmatprep.subr.mxu0 %v155
    %400 = vmatpush1.msra.mxu0 %v154
    %401 = vmatprep.subr.mxu0 %v159
    %402 = vmatpush1.msra.mxu0 %v158
    %403 = vmatprep.subr.mxu0 %v163
    %404 = vmatpush1.msra.mxu0 %v162
    %405 = vmatprep.subr.mxu0 0.0
    %406 = vmatpush1.msra.mxu0 0.0
    %407 = vmatprep.subr.mxu0 0.0
    %408 = vmatpush1.msra.mxu0 0.0
    %409 = vmatprep.subr.mxu0 0.0
    %410 = vmatpush1.msra.mxu0 0.0
    %411 = vmatprep.subr.mxu0 0.0
    %412 = vmatpush1.msra.mxu0 0.0
    %413 = vmatprep.subr.mxu0 0.0
    %414 = vmatpush1.msra.mxu0 0.0
    %415 = vmatprep.subr.mxu0 0.0
    %416 = vmatpush1.msra.mxu0 0.0
    %417 = vmatprep.subr.mxu0 0.0
    %418 = vmatpush1.msra.mxu0 0.0
    %419 = vmatprep.subr.mxu0 0.0
    %420 = vmatpush1.msra.mxu0 0.0
    %421 = vmatprep.subr.mxu0 0.0
    %422 = vmatpush1.msra.mxu0 0.0
    %423 = vmatprep.subr.mxu0 0.0
    %424 = vmatpush1.msra.mxu0 0.0
    %425 = vmatprep.subr.mxu0 0.0
    %426 = vmatpush1.msra.mxu0 0.0
    %427 = vmatprep.subr.mxu0 0.0
    %428 = vmatpush1.msra.mxu0 0.0
    %429 = vmatprep.subr.mxu0 0.0
    %430 = vmatpush1.msra.mxu0 0.0
    %431 = vmatprep.subr.mxu0 0.0
    %432 = vmatpush1.msra.mxu0 0.0
    %433 = vmatprep.subr.mxu0 0.0
    %434 = vmatpush1.msra.mxu0 0.0
    %435 = vmatprep.subr.mxu0 0.0
    %436 = vmatpush1.msra.mxu0 0.0
    %437 = vmatprep.mubr.f32.mxu0 0.0
    %438 = vmatmul.mubr.f32.gmra.mrb[0].mxu0 %v101
    %v439 = vpop.f32.mrb[0].mxu0
    %v440 = vadd.f32 %v298, %v439
    %v441 = vpop.f32.mrb[0].mxu0
    %v442 = vadd.f32 %v300, %v441
    %443 = vdwg.mxu0
    %444 = vmatprep.subr.mxu0 %v105
    %445 = vmatpush1.msra.mxu0 %v104
    %446 = vmatprep.subr.mxu0 %v109
    %447 = vmatpush1.msra.mxu0 %v108
    %448 = vmatprep.subr.mxu0 %v113
    %449 = vmatpush1.msra.mxu0 %v112
    %450 = vmatprep.subr.mxu0 %v117
    %451 = vmatpush1.msra.mxu0 %v116
    %452 = vmatprep.subr.mxu0 %v121
    %453 = vmatpush1.msra.mxu0 %v120
    %454 = vmatprep.subr.mxu0 %v125
    %455 = vmatpush1.msra.mxu0 %v124
    %456 = vmatprep.subr.mxu0 %v129
    %457 = vmatpush1.msra.mxu0 %v128
    %458 = vmatprep.subr.mxu0 %v133
    %459 = vmatpush1.msra.mxu0 %v132
    %460 = vmatprep.subr.mxu0 %v137
    %461 = vmatpush1.msra.mxu0 %v136
    %462 = vmatprep.subr.mxu0 %v141
    %463 = vmatpush1.msra.mxu0 %v140
    %464 = vmatprep.subr.mxu0 %v145
    %465 = vmatpush1.msra.mxu0 %v144
    %466 = vmatprep.subr.mxu0 %v149
    %467 = vmatpush1.msra.mxu0 %v148
    %468 = vmatprep.subr.mxu0 %v153
    %469 = vmatpush1.msra.mxu0 %v152
    %470 = vmatprep.subr.mxu0 %v157
    %471 = vmatpush1.msra.mxu0 %v156
    %472 = vmatprep.subr.mxu0 %v161
    %473 = vmatpush1.msra.mxu0 %v160
    %474 = vmatprep.subr.mxu0 %v165
    %475 = vmatpush1.msra.mxu0 %v164
    %476 = vmatprep.subr.mxu0 0.0
    %477 = vmatpush1.msra.mxu0 0.0
    %478 = vmatprep.subr.mxu0 0.0
    %479 = vmatpush1.msra.mxu0 0.0
    %480 = vmatprep.subr.mxu0 0.0
    %481 = vmatpush1.msra.mxu0 0.0
    %482 = vmatprep.subr.mxu0 0.0
    %483 = vmatpush1.msra.mxu0 0.0
    %484 = vmatprep.subr.mxu0 0.0
    %485 = vmatpush1.msra.mxu0 0.0
    %486 = vmatprep.subr.mxu0 0.0
    %487 = vmatpush1.msra.mxu0 0.0
    %488 = vmatprep.subr.mxu0 0.0
    %489 = vmatpush1.msra.mxu0 0.0
    %490 = vmatprep.subr.mxu0 0.0
    %491 = vmatpush1.msra.mxu0 0.0
    %492 = vmatprep.subr.mxu0 0.0
    %493 = vmatpush1.msra.mxu0 0.0
    %494 = vmatprep.subr.mxu0 0.0
    %495 = vmatpush1.msra.mxu0 0.0
    %496 = vmatprep.subr.mxu0 0.0
    %497 = vmatpush1.msra.mxu0 0.0
    %498 = vmatprep.subr.mxu0 0.0
    %499 = vmatpush1.msra.mxu0 0.0
    %500 = vmatprep.subr.mxu0 0.0
    %501 = vmatpush1.msra.mxu0 0.0
    %502 = vmatprep.subr.mxu0 0.0
    %503 = vmatpush1.msra.mxu0 0.0
    %504 = vmatprep.subr.mxu0 0.0
    %505 = vmatpush1.msra.mxu0 0.0
    %506 = vmatprep.subr.mxu0 0.0
    %507 = vmatpush1.msra.mxu0 0.0
    %508 = vmatprep.mubr.f32.mxu0 0.0
    %509 = vmatmul.mubr.f32.gmra.mrb[0].mxu0 %v101
    %v510 = vpop.f32.mrb[0].mxu0
    %v511 = vadd.f32 %v369, %v510
    %v512 = vpop.f32.mrb[0].mxu0
    %v513 = vadd.f32 %v371, %v512
    %514 = vdwg.mxu0
    %v515 = vld [vmem:[#allocation11] sm:$0xf]
    %v517 = vlaneseq
    %v518 = vshrl.u32 %v517, 7
    %v519 = vsub.s32 0, %v518
    %v520 = vrot.slane %v515, %v519
    %v521 = vlaneseq
    %v522 = vshrl.u32 %v521, 7
    %v523 = vsub.s32 1, %v522
    %v524 = vrot.slane %v515, %v523
    %v525 = vlaneseq
    %v526 = vshrl.u32 %v525, 7
    %v527 = vsub.s32 2, %v526
    %v528 = vrot.slane %v515, %v527
    %v529 = vlaneseq
    %v530 = vshrl.u32 %v529, 7
    %v531 = vsub.s32 3, %v530
    %v532 = vrot.slane %v515, %v531
    %v537 = vadd.f32 %v440, %v520
    %v538 = vadd.f32 %v442, %v524
    %v539 = vadd.f32 %v511, %v528
    %v540 = vadd.f32 %v513, %v532
    %v541 = vxor.u32 %v537, 2147483648
    %v542 = vmul.f32 %v541, 1.442695
    %v543 = vpow.pop %v542
    %v544 = vadd.f32 %v543, 1.0
    %v545 = vrcp.pop %v544
    %v546 = vmul.f32 1.0, %v545
    %v547 = vxor.u32 %v538, 2147483648
    %v548 = vmul.f32 %v547, 1.442695
    %v549 = vpow.pop %v548
    %v550 = vadd.f32 %v549, 1.0
    %v551 = vrcp.pop %v550
    %v552 = vmul.f32 1.0, %v551
    %v553 = vtanh.pop %v539
    %v554 = vxor.u32 %v540, 2147483648
    %v555 = vmul.f32 %v554, 1.442695
    %v556 = vpow.pop %v555
    %v557 = vadd.f32 %v556, 1.0
    %v558 = vrcp.pop %v557
    %v559 = vmul.f32 1.0, %v558
    %v560 = vld [vmem:[#allocation7] sm:$0xff]
    %v561 = vmul.f32 %v560, %v552
    %v562 = vmul.f32 %v546, %v553
    %v563 = vadd.f32 %v561, %v562
    %v564 = vtanh.pop %v563
    %v565 = vmul.f32 %v559, %v564
    %566 = vst [vmem:[#allocation14] sm:$0xff] %v563
    %567 = vst [vmem:[#allocation13] sm:$0xff] %v565
    // Predicated region
    $region50: #{_lstm_cell_step.1} parent=1 // pred_check
      _
    $region51: #{_lstm_cell_step.1} parent=1 // pred_check_branch
      %569 = sbr.rel (0) target = $region53
    $region52: #{_lstm_cell_step.1} parent=1 // pred_region
      %s571 = ssub.s32 128, 128
      %572 = vsyncadd [#allocation4], %s571
      %s574 = sshll.u32 [#allocation13], 4
      %s575 = int_to_ptr.vmem [resolvable:$true] %s574
      %577 = dma.vmem_to_hbm [thread:$0]  %s575, 128, %s6, [#allocation4]
    $region53: #{_lstm_cell_step.1} parent=1 // pred_fallthru
      _
    // Predicated region
    $region54: #{_lstm_cell_step.1} parent=1 // pred_check
      _
    $region55: #{_lstm_cell_step.1} parent=1 // pred_check_branch
      %579 = sbr.rel (0) target = $region57
    $region56: #{_lstm_cell_step.1} parent=1 // pred_region
      %s581 = ssub.s32 128, 128
      %582 = vsyncadd [#allocation15], %s581
      %s584 = sshll.u32 [#allocation14], 4
      %s585 = int_to_ptr.vmem [resolvable:$true] %s584
      %587 = dma.vmem_to_hbm [thread:$0]  %s585, 128, %s7, [#allocation15]
    $region57: #{_lstm_cell_step.1} parent=1 // pred_fallthru
      _
    // Predicated region
    $region58: #{_lstm_cell_step.1} parent=1 // pred_check
      _
    $region59: #{_lstm_cell_step.1} parent=1 // pred_check_branch
      %589 = sbr.rel (0) target = $region61
    $region60: #{_lstm_cell_step.1} parent=1 // pred_region
      %590 = dma.done [#allocation4], 128
    $region61: #{_lstm_cell_step.1} parent=1 // pred_fallthru
      _
    // Predicated region
    $region62: #{_lstm_cell_step.1} parent=1 // pred_check
      _
    $region63: #{_lstm_cell_step.1} parent=1 // pred_check_branch
      %592 = sbr.rel (0) target = $region65
    $region64: #{_lstm_cell_step.1} parent=1 // pred_region
      %593 = dma.done [#allocation15], 128
    $region65: #{_lstm_cell_step.1} parent=1 // pred_fallthru
      _
    %594 = vsyncpa [#allocation3], 1
    %595 = vsyncpa [#allocation6], 1
    %596 = vsyncpa [#allocation9], 1
    %597 = vsyncpa [#allocation12], 1
    %598 = vsyncpa [#allocation4], 1
    %599 = vsyncpa [#allocation15], 1

// kernel: _lstm_cell_step.1
$region0: #{_lstm_cell_step.1}
  #allocation0 [shape = 'u32[]', space=smem, size = 0x4, offset = 0x4, fixed_abs, tag = 'smem constant byte address 0x4 - core index']
  #allocation1 [shape = 'u32[144,128]{1,0:T(1,128)}', space=vmem, size = 0x12000, scoped, tag = 'internal scratch']
  %s0 = inlined_call_operand.hbm [shape: f32[8,128], index: 0, kind: input, shape index: {}]
  %s1 = inlined_call_operand.hbm [shape: f32[8,128], index: 1, kind: input, shape index: {}]
  %s2 = inlined_call_operand.hbm [shape: f32[8,128], index: 2, kind: input, shape index: {}]
  %s3 = inlined_call_operand.hbm [shape: f32[128,512], index: 3, kind: input, shape index: {}]
  %s4 = inlined_call_operand.hbm [shape: f32[128,512], index: 4, kind: input, shape index: {}]
  %s5 = inlined_call_operand.hbm [shape: f32[1,512], index: 5, kind: input, shape index: {}]
  %s6 = inlined_call_operand.hbm [shape: f32[8,128], index: 6, kind: output, shape index: {0}]
  %s7 = inlined_call_operand.hbm [shape: f32[8,128], index: 7, kind: output, shape index: {1}]
  %8 = xla_tuple %s6, %s7
  %s9 = sld [smem:[#allocation0]]
  $region66: #{_lstm_cell_step.1} parent=0
    _
  %s11 = ssub.s32 1, %s9
  %s12 = scalar_select 0, %s11, %s9
  $region1: #{_lstm_cell_step.1} parent=0
    #allocation2 [shape = 'u8[4096]{0}', space=vmem, size = 0x1000, scoped, tag = 'input window, operand 0, single buffered']
    #allocation3 [shape = 's32[1]{0}', space=sflag, size = 0x4, scoped, tag = 'scoped memory for _lstm_cell_step.1']
    #allocation4 [shape = 's32[1]{0}', space=sflag, size = 0x4, scoped, tag = 'scoped memory for _lstm_cell_step.1']
    #allocation5 [shape = 'u8[4096]{0}', space=vmem, size = 0x1000, scoped, tag = 'input window, operand 1, single buffered']
    #allocation6 [shape = 's32[1]{0}', space=sflag, size = 0x4, scoped, tag = 'scoped memory for _lstm_cell_step.1']
    #allocation7 [shape = 'u8[4096]{0}', space=vmem, size = 0x1000, scoped, tag = 'input window, operand 2, single buffered']
    #allocation8 [shape = 'u8[262144]{0}', space=vmem, size = 0x40000, scoped, tag = 'input window, operand 3, single buffered']
    #allocation9 [shape = 's32[1]{0}', space=sflag, size = 0x4, scoped, tag = 'scoped memory for _lstm_cell_step.1']
    #allocation10 [shape = 'u8[262144]{0}', space=vmem, size = 0x40000, scoped, tag = 'input window, operand 4, single buffered']
    #allocation11 [shape = 'u8[2048]{0}', space=vmem, size = 0x800, scoped, tag = 'input window, operand 5, single buffered']
    #allocation12 [shape = 's32[1]{0}', space=sflag, size = 0x4, scoped, tag = 'scoped memory for _lstm_cell_step.1']
    #allocation13 [shape = 'u8[4096]{0}', space=vmem, size = 0x1000, scoped, tag = 'output window, operand 0, single buffered']
    #allocation14 [shape = 'u8[4096]{0}', space=vmem, size = 0x1000, scoped, tag = 'output window, operand 1, single buffered']
    #allocation15 [shape = 's32[1]{0}', space=sflag, size = 0x4, scoped, tag = 'scoped memory for _lstm_cell_step.1']
    %13 = vsyncpa [#allocation3], 0
    %14 = vsyncpa [#allocation6], 0
    %15 = vsyncpa [#allocation9], 0
    %16 = vsyncpa [#allocation12], 0
    %17 = vsyncpa [#allocation4], 0
    %18 = vsyncpa [#allocation15], 0
    // Predicated region
    $region2: #{_lstm_cell_step.1} parent=1 // pred_check
      _
    $region3: #{_lstm_cell_step.1} parent=1 // pred_check_branch
      %20 = sbr.rel (0) target = $region5
    $region4: #{_lstm_cell_step.1} parent=1 // pred_region
      %s22 = ssub.s32 128, 128
      %23 = vsyncadd [#allocation3], %s22
      %s25 = sshll.u32 [#allocation2], 4
      %s26 = int_to_ptr.vmem [resolvable:$true] %s25
      %28 = dma.hbm_to_vmem [thread:$0]  %s0, 128, %s26, [#allocation3]
    $region5: #{_lstm_cell_step.1} parent=1 // pred_fallthru
      _
    // Predicated region
    $region6: #{_lstm_cell_step.1} parent=1 // pred_check
      _
    $region7: #{_lstm_cell_step.1} parent=1 // pred_check_branch
      %30 = sbr.rel (0) target = $region9
    $region8: #{_lstm_cell_step.1} parent=1 // pred_region
      %s32 = ssub.s32 128, 128
      %33 = vsyncadd [#allocation6], %s32
      %s35 = sshll.u32 [#allocation5], 4
      %s36 = int_to_ptr.vmem [resolvable:$true] %s35
      %38 = dma.hbm_to_vmem [thread:$0]  %s1, 128, %s36, [#allocation6]
    $region9: #{_lstm_cell_step.1} parent=1 // pred_fallthru
      _
    // Predicated region
    $region10: #{_lstm_cell_step.1} parent=1 // pred_check
      _
    $region11: #{_lstm_cell_step.1} parent=1 // pred_check_branch
      %40 = sbr.rel (0) target = $region13
    $region12: #{_lstm_cell_step.1} parent=1 // pred_region
      %s42 = ssub.s32 128, 128
      %43 = vsyncadd [#allocation6], %s42
      %s45 = sshll.u32 [#allocation7], 4
      %s46 = int_to_ptr.vmem [resolvable:$true] %s45
      %48 = dma.hbm_to_vmem [thread:$0]  %s2, 128, %s46, [#allocation6]
    $region13: #{_lstm_cell_step.1} parent=1 // pred_fallthru
      _
    // Predicated region
    $region14: #{_lstm_cell_step.1} parent=1 // pred_check
      _
    $region15: #{_lstm_cell_step.1} parent=1 // pred_check_branch
      %50 = sbr.rel (0) target = $region17
    $region16: #{_lstm_cell_step.1} parent=1 // pred_region
      %s52 = ssub.s32 8192, 8192
      %53 = vsyncadd [#allocation9], %s52
      %s54 = sshll.u32 [#allocation8], 4
      %s55 = int_to_ptr.vmem [resolvable:$true] %s54
      %60 = dma.hbm_to_vmem [thread:$0]  %s3, 8192, %s55, [#allocation9], 512, 512, 32
    $region17: #{_lstm_cell_step.1} parent=1 // pred_fallthru
      _
    // Predicated region
    $region18: #{_lstm_cell_step.1} parent=1 // pred_check
      _
    $region19: #{_lstm_cell_step.1} parent=1 // pred_check_branch
      %62 = sbr.rel (0) target = $region21
    $region20: #{_lstm_cell_step.1} parent=1 // pred_region
      %s64 = ssub.s32 8192, 8192
      %65 = vsyncadd [#allocation9], %s64
      %s66 = sshll.u32 [#allocation10], 4
      %s67 = int_to_ptr.vmem [resolvable:$true] %s66
      %72 = dma.hbm_to_vmem [thread:$0]  %s4, 8192, %s67, [#allocation9], 512, 512, 32
    $region21: #{_lstm_cell_step.1} parent=1 // pred_fallthru
      _
    // Predicated region
    $region22: #{_lstm_cell_step.1} parent=1 // pred_check
      _
    $region23: #{_lstm_cell_step.1} parent=1 // pred_check_branch
      %74 = sbr.rel (0) target = $region25
    $region24: #{_lstm_cell_step.1} parent=1 // pred_region
      %s76 = ssub.s32 64, 64
      %77 = vsyncadd [#allocation12], %s76
      %s79 = sshll.u32 [#allocation11], 4
      %s80 = int_to_ptr.vmem [resolvable:$true] %s79
      %82 = dma.hbm_to_vmem [thread:$0]  %s5, 64, %s80, [#allocation12]
    $region25: #{_lstm_cell_step.1} parent=1 // pred_fallthru
      _
    // Predicated region
    $region26: #{_lstm_cell_step.1} parent=1 // pred_check
      _
    $region27: #{_lstm_cell_step.1} parent=1 // pred_check_branch
      %84 = sbr.rel (0) target = $region29
    $region28: #{_lstm_cell_step.1} parent=1 // pred_region
      %85 = dma.done [#allocation3], 128
    $region29: #{_lstm_cell_step.1} parent=1 // pred_fallthru
      _
    // Predicated region
    $region30: #{_lstm_cell_step.1} parent=1 // pred_check
      _
    $region31: #{_lstm_cell_step.1} parent=1 // pred_check_branch
      %87 = sbr.rel (0) target = $region33
    $region32: #{_lstm_cell_step.1} parent=1 // pred_region
      %88 = dma.done [#allocation6], 128
    $region33: #{_lstm_cell_step.1} parent=1 // pred_fallthru
      _
    // Predicated region
    $region34: #{_lstm_cell_step.1} parent=1 // pred_check
      _
    $region35: #{_lstm_cell_step.1} parent=1 // pred_check_branch
      %90 = sbr.rel (0) target = $region37
    $region36: #{_lstm_cell_step.1} parent=1 // pred_region
      %91 = dma.done [#allocation6], 128
    $region37: #{_lstm_cell_step.1} parent=1 // pred_fallthru
      _
    // Predicated region
    $region38: #{_lstm_cell_step.1} parent=1 // pred_check
      _
    $region39: #{_lstm_cell_step.1} parent=1 // pred_check_branch
      %93 = sbr.rel (0) target = $region41
    $region40: #{_lstm_cell_step.1} parent=1 // pred_region
      %94 = dma.done [#allocation9], 8192
    $region41: #{_lstm_cell_step.1} parent=1 // pred_fallthru
      _
    // Predicated region
    $region42: #{_lstm_cell_step.1} parent=1 // pred_check
      _
    $region43: #{_lstm_cell_step.1} parent=1 // pred_check_branch
      %96 = sbr.rel (0) target = $region45
    $region44: #{_lstm_cell_step.1} parent=1 // pred_region
      %97 = dma.done [#allocation9], 8192
    $region45: #{_lstm_cell_step.1} parent=1 // pred_fallthru
      _
    // Predicated region
    $region46: #{_lstm_cell_step.1} parent=1 // pred_check
      _
    $region47: #{_lstm_cell_step.1} parent=1 // pred_check_branch
      %99 = sbr.rel (0) target = $region49
    $region48: #{_lstm_cell_step.1} parent=1 // pred_region
      %100 = dma.done [#allocation12], 64
    $region49: #{_lstm_cell_step.1} parent=1 // pred_fallthru
      _
    %v101 = vld [vmem:[#allocation2] sm:$0xff]
    %v102 = vld [vmem:[#allocation8] sm:$0xff]
    %v103 = vld [vmem:[#allocation8 + $0x8] sm:$0xff]
    %v104 = vld [vmem:[#allocation8 + $0x10] sm:$0xff]
    %v105 = vld [vmem:[#allocation8 + $0x18] sm:$0xff]
    %v106 = vld [vmem:[#allocation8 + $0x20] sm:$0xff]
    %v107 = vld [vmem:[#allocation8 + $0x28] sm:$0xff]
    %v108 = vld [vmem:[#allocation8 + $0x30] sm:$0xff]
    %v109 = vld [vmem:[#allocation8 + $0x38] sm:$0xff]
    %v110 = vld [vmem:[#allocation8 + $0x40] sm:$0xff]
    %v111 = vld [vmem:[#allocation8 + $0x48] sm:$0xff]
    %v112 = vld [vmem:[#allocation8 + $0x50] sm:$0xff]
    %v113 = vld [vmem:[#allocation8 + $0x58] sm:$0xff]
    %v114 = vld [vmem:[#allocation8 + $0x60] sm:$0xff]
    %v115 = vld [vmem:[#allocation8 + $0x68] sm:$0xff]
    %v116 = vld [vmem:[#allocation8 + $0x70] sm:$0xff]
    %v117 = vld [vmem:[#allocation8 + $0x78] sm:$0xff]
    %v118 = vld [vmem:[#allocation8 + $0x80] sm:$0xff]
    %v119 = vld [vmem:[#allocation8 + $0x88] sm:$0xff]
    %v120 = vld [vmem:[#allocation8 + $0x90] sm:$0xff]
    %v121 = vld [vmem:[#allocation8 + $0x98] sm:$0xff]
    %v122 = vld [vmem:[#allocation8 + $0xa0] sm:$0xff]
    %v123 = vld [vmem:[#allocation8 + $0xa8] sm:$0xff]
    %v124 = vld [vmem:[#allocation8 + $0xb0] sm:$0xff]
    %v125 = vld [vmem:[#allocation8 + $0xb8] sm:$0xff]
    %v126 = vld [vmem:[#allocation8 + $0xc0] sm:$0xff]
    %v127 = vld [vmem:[#allocation8 + $0xc8] sm:$0xff]
    %v128 = vld [vmem:[#allocation8 + $0xd0] sm:$0xff]
    %v129 = vld [vmem:[#allocation8 + $0xd8] sm:$0xff]
    %v130 = vld [vmem:[#allocation8 + $0xe0] sm:$0xff]
    %v131 = vld [vmem:[#allocation8 + $0xe8] sm:$0xff]
    %v132 = vld [vmem:[#allocation8 + $0xf0] sm:$0xff]
    %v133 = vld [vmem:[#allocation8 + $0xf8] sm:$0xff]
    %v134 = vld [vmem:[#allocation8 + $0x100] sm:$0xff]
    %v135 = vld [vmem:[#allocation8 + $0x108] sm:$0xff]
    %v136 = vld [vmem:[#allocation8 + $0x110] sm:$0xff]
    %v137 = vld [vmem:[#allocation8 + $0x118] sm:$0xff]
    %v138 = vld [vmem:[#allocation8 + $0x120] sm:$0xff]
    %v139 = vld [vmem:[#allocation8 + $0x128] sm:$0xff]
    %v140 = vld [vmem:[#allocation8 + $0x130] sm:$0xff]
    %v141 = vld [vmem:[#allocation8 + $0x138] sm:$0xff]
    %v142 = vld [vmem:[#allocation8 + $0x140] sm:$0xff]
    %v143 = vld [vmem:[#allocation8 + $0x148] sm:$0xff]
    %v144 = vld [vmem:[#allocation8 + $0x150] sm:$0xff]
    %v145 = vld [vmem:[#allocation8 + $0x158] sm:$0xff]
    %v146 = vld [vmem:[#allocation8 + $0x160] sm:$0xff]
    %v147 = vld [vmem:[#allocation8 + $0x168] sm:$0xff]
    %v148 = vld [vmem:[#allocation8 + $0x170] sm:$0xff]
    %v149 = vld [vmem:[#allocation8 + $0x178] sm:$0xff]
    %v150 = vld [vmem:[#allocation8 + $0x180] sm:$0xff]
    %v151 = vld [vmem:[#allocation8 + $0x188] sm:$0xff]
    %v152 = vld [vmem:[#allocation8 + $0x190] sm:$0xff]
    %v153 = vld [vmem:[#allocation8 + $0x198] sm:$0xff]
    %v154 = vld [vmem:[#allocation8 + $0x1a0] sm:$0xff]
    %v155 = vld [vmem:[#allocation8 + $0x1a8] sm:$0xff]
    %v156 = vld [vmem:[#allocation8 + $0x1b0] sm:$0xff]
    %v157 = vld [vmem:[#allocation8 + $0x1b8] sm:$0xff]
    %v158 = vld [vmem:[#allocation8 + $0x1c0] sm:$0xff]
    %v159 = vld [vmem:[#allocation8 + $0x1c8] sm:$0xff]
    %v160 = vld [vmem:[#allocation8 + $0x1d0] sm:$0xff]
    %v161 = vld [vmem:[#allocation8 + $0x1d8] sm:$0xff]
    %v162 = vld [vmem:[#allocation8 + $0x1e0] sm:$0xff]
    %v163 = vld [vmem:[#allocation8 + $0x1e8] sm:$0xff]
    %v164 = vld [vmem:[#allocation8 + $0x1f0] sm:$0xff]
    %v165 = vld [vmem:[#allocation8 + $0x1f8] sm:$0xff]
    %v166 = vld [vmem:[#allocation5] sm:$0xff]
    %v167 = vld [vmem:[#allocation10] sm:$0xff]
    %v168 = vld [vmem:[#allocation10 + $0x8] sm:$0xff]
    %v169 = vld [vmem:[#allocation10 + $0x10] sm:$0xff]
    %v170 = vld [vmem:[#allocation10 + $0x18] sm:$0xff]
    %v171 = vld [vmem:[#allocation10 + $0x20] sm:$0xff]
    %v172 = vld [vmem:[#allocation10 + $0x28] sm:$0xff]
    %v173 = vld [vmem:[#allocation10 + $0x30] sm:$0xff]
    %v174 = vld [vmem:[#allocation10 + $0x38] sm:$0xff]
    %v175 = vld [vmem:[#allocation10 + $0x40] sm:$0xff]
    %v176 = vld [vmem:[#allocation10 + $0x48] sm:$0xff]
    %v177 = vld [vmem:[#allocation10 + $0x50] sm:$0xff]
    %v178 = vld [vmem:[#allocation10 + $0x58] sm:$0xff]
    %v179 = vld [vmem:[#allocation10 + $0x60] sm:$0xff]
    %v180 = vld [vmem:[#allocation10 + $0x68] sm:$0xff]
    %v181 = vld [vmem:[#allocation10 + $0x70] sm:$0xff]
    %v182 = vld [vmem:[#allocation10 + $0x78] sm:$0xff]
    %v183 = vld [vmem:[#allocation10 + $0x80] sm:$0xff]
    %v184 = vld [vmem:[#allocation10 + $0x88] sm:$0xff]
    %v185 = vld [vmem:[#allocation10 + $0x90] sm:$0xff]
    %v186 = vld [vmem:[#allocation10 + $0x98] sm:$0xff]
    %v187 = vld [vmem:[#allocation10 + $0xa0] sm:$0xff]
    %v188 = vld [vmem:[#allocation10 + $0xa8] sm:$0xff]
    %v189 = vld [vmem:[#allocation10 + $0xb0] sm:$0xff]
    %v190 = vld [vmem:[#allocation10 + $0xb8] sm:$0xff]
    %v191 = vld [vmem:[#allocation10 + $0xc0] sm:$0xff]
    %v192 = vld [vmem:[#allocation10 + $0xc8] sm:$0xff]
    %v193 = vld [vmem:[#allocation10 + $0xd0] sm:$0xff]
    %v194 = vld [vmem:[#allocation10 + $0xd8] sm:$0xff]
    %v195 = vld [vmem:[#allocation10 + $0xe0] sm:$0xff]
    %v196 = vld [vmem:[#allocation10 + $0xe8] sm:$0xff]
    %v197 = vld [vmem:[#allocation10 + $0xf0] sm:$0xff]
    %v198 = vld [vmem:[#allocation10 + $0xf8] sm:$0xff]
    %v199 = vld [vmem:[#allocation10 + $0x100] sm:$0xff]
    %v200 = vld [vmem:[#allocation10 + $0x108] sm:$0xff]
    %v201 = vld [vmem:[#allocation10 + $0x110] sm:$0xff]
    %v202 = vld [vmem:[#allocation10 + $0x118] sm:$0xff]
    %v203 = vld [vmem:[#allocation10 + $0x120] sm:$0xff]
    %v204 = vld [vmem:[#allocation10 + $0x128] sm:$0xff]
    %v205 = vld [vmem:[#allocation10 + $0x130] sm:$0xff]
    %v206 = vld [vmem:[#allocation10 + $0x138] sm:$0xff]
    %v207 = vld [vmem:[#allocation10 + $0x140] sm:$0xff]
    %v208 = vld [vmem:[#allocation10 + $0x148] sm:$0xff]
    %v209 = vld [vmem:[#allocation10 + $0x150] sm:$0xff]
    %v210 = vld [vmem:[#allocation10 + $0x158] sm:$0xff]
    %v211 = vld [vmem:[#allocation10 + $0x160] sm:$0xff]
    %v212 = vld [vmem:[#allocation10 + $0x168] sm:$0xff]
    %v213 = vld [vmem:[#allocation10 + $0x170] sm:$0xff]
    %v214 = vld [vmem:[#allocation10 + $0x178] sm:$0xff]
    %v215 = vld [vmem:[#allocation10 + $0x180] sm:$0xff]
    %v216 = vld [vmem:[#allocation10 + $0x188] sm:$0xff]
    %v217 = vld [vmem:[#allocation10 + $0x190] sm:$0xff]
    %v218 = vld [vmem:[#allocation10 + $0x198] sm:$0xff]
    %v219 = vld [vmem:[#allocation10 + $0x1a0] sm:$0xff]
    %v220 = vld [vmem:[#allocation10 + $0x1a8] sm:$0xff]
    %v221 = vld [vmem:[#allocation10 + $0x1b0] sm:$0xff]
    %v222 = vld [vmem:[#allocation10 + $0x1b8] sm:$0xff]
    %v223 = vld [vmem:[#allocation10 + $0x1c0] sm:$0xff]
    %v224 = vld [vmem:[#allocation10 + $0x1c8] sm:$0xff]
    %v225 = vld [vmem:[#allocation10 + $0x1d0] sm:$0xff]
    %v226 = vld [vmem:[#allocation10 + $0x1d8] sm:$0xff]
    %v227 = vld [vmem:[#allocation10 + $0x1e0] sm:$0xff]
    %v228 = vld [vmem:[#allocation10 + $0x1e8] sm:$0xff]
    %v229 = vld [vmem:[#allocation10 + $0x1f0] sm:$0xff]
    %v230 = vld [vmem:[#allocation10 + $0x1f8] sm:$0xff]
    %231 = vmatprep.subr.mxu0 %v168
    %232 = vmatpush1.msra.mxu0 %v167
    %233 = vmatprep.subr.mxu0 %v172
    %234 = vmatpush1.msra.mxu0 %v171
    %235 = vmatprep.subr.mxu0 %v176
    %236 = vmatpush1.msra.mxu0 %v175
    %237 = vmatprep.subr.mxu0 %v180
    %238 = vmatpush1.msra.mxu0 %v179
    %239 = vmatprep.subr.mxu0 %v184
    %240 = vmatpush1.msra.mxu0 %v183
    %241 = vmatprep.subr.mxu0 %v188
    %242 = vmatpush1.msra.mxu0 %v187
    %243 = vmatprep.subr.mxu0 %v192
    %244 = vmatpush1.msra.mxu0 %v191
    %245 = vmatprep.subr.mxu0 %v196
    %246 = vmatpush1.msra.mxu0 %v195
    %247 = vmatprep.subr.mxu0 %v200
    %248 = vmatpush1.msra.mxu0 %v199
    %249 = vmatprep.subr.mxu0 %v204
    %250 = vmatpush1.msra.mxu0 %v203
    %251 = vmatprep.subr.mxu0 %v208
    %252 = vmatpush1.msra.mxu0 %v207
    %253 = vmatprep.subr.mxu0 %v212
    %254 = vmatpush1.msra.mxu0 %v211
    %255 = vmatprep.subr.mxu0 %v216
    %256 = vmatpush1.msra.mxu0 %v215
    %257 = vmatprep.subr.mxu0 %v220
    %258 = vmatpush1.msra.mxu0 %v219
    %259 = vmatprep.subr.mxu0 %v224
    %260 = vmatpush1.msra.mxu0 %v223
    %261 = vmatprep.subr.mxu0 %v228
    %262 = vmatpush1.msra.mxu0 %v227
    %263 = vmatprep.subr.mxu0 0.0
    %264 = vmatpush1.msra.mxu0 0.0
    %265 = vmatprep.subr.mxu0 0.0
    %266 = vmatpush1.msra.mxu0 0.0
    %267 = vmatprep.subr.mxu0 0.0
    %268 = vmatpush1.msra.mxu0 0.0
    %269 = vmatprep.subr.mxu0 0.0
    %270 = vmatpush1.msra.mxu0 0.0
    %271 = vmatprep.subr.mxu0 0.0
    %272 = vmatpush1.msra.mxu0 0.0
    %273 = vmatprep.subr.mxu0 0.0
    %274 = vmatpush1.msra.mxu0 0.0
    %275 = vmatprep.subr.mxu0 0.0
    %276 = vmatpush1.msra.mxu0 0.0
    %277 = vmatprep.subr.mxu0 0.0
    %278 = vmatpush1.msra.mxu0 0.0
    %279 = vmatprep.subr.mxu0 0.0
    %280 = vmatpush1.msra.mxu0 0.0
    %281 = vmatprep.subr.mxu0 0.0
    %282 = vmatpush1.msra.mxu0 0.0
    %283 = vmatprep.subr.mxu0 0.0
    %284 = vmatpush1.msra.mxu0 0.0
    %285 = vmatprep.subr.mxu0 0.0
    %286 = vmatpush1.msra.mxu0 0.0
    %287 = vmatprep.subr.mxu0 0.0
    %288 = vmatpush1.msra.mxu0 0.0
    %289 = vmatprep.subr.mxu0 0.0
    %290 = vmatpush1.msra.mxu0 0.0
    %291 = vmatprep.subr.mxu0 0.0
    %292 = vmatpush1.msra.mxu0 0.0
    %293 = vmatprep.subr.mxu0 0.0
    %294 = vmatpush1.msra.mxu0 0.0
    %295 = vmatprep.mubr.f32.mxu0 0.0
    %296 = vmatmul.mubr.f32.gmra.mrb[0].mxu0 %v166
    %v297 = vpop.f32.mrb[0].mxu0
    %v298 = vadd.f32 0.0, %v297
    %v299 = vpop.f32.mrb[0].mxu0
    %v300 = vadd.f32 0.0, %v299
    %301 = vdwg.mxu0
    %302 = vmatprep.subr.mxu0 %v170
    %303 = vmatpush1.msra.mxu0 %v169
    %304 = vmatprep.subr.mxu0 %v174
    %305 = vmatpush1.msra.mxu0 %v173
    %306 = vmatprep.subr.mxu0 %v178
    %307 = vmatpush1.msra.mxu0 %v177
    %308 = vmatprep.subr.mxu0 %v182
    %309 = vmatpush1.msra.mxu0 %v181
    %310 = vmatprep.subr.mxu0 %v186
    %311 = vmatpush1.msra.mxu0 %v185
    %312 = vmatprep.subr.mxu0 %v190
    %313 = vmatpush1.msra.mxu0 %v189
    %314 = vmatprep.subr.mxu0 %v194
    %315 = vmatpush1.msra.mxu0 %v193
    %316 = vmatprep.subr.mxu0 %v198
    %317 = vmatpush1.msra.mxu0 %v197
    %318 = vmatprep.subr.mxu0 %v202
    %319 = vmatpush1.msra.mxu0 %v201
    %320 = vmatprep.subr.mxu0 %v206
    %321 = vmatpush1.msra.mxu0 %v205
    %322 = vmatprep.subr.mxu0 %v210
    %323 = vmatpush1.msra.mxu0 %v209
    %324 = vmatprep.subr.mxu0 %v214
    %325 = vmatpush1.msra.mxu0 %v213
    %326 = vmatprep.subr.mxu0 %v218
    %327 = vmatpush1.msra.mxu0 %v217
    %328 = vmatprep.subr.mxu0 %v222
    %329 = vmatpush1.msra.mxu0 %v221
    %330 = vmatprep.subr.mxu0 %v226
    %331 = vmatpush1.msra.mxu0 %v225
    %332 = vmatprep.subr.mxu0 %v230
    %333 = vmatpush1.msra.mxu0 %v229
    %334 = vmatprep.subr.mxu0 0.0
    %335 = vmatpush1.msra.mxu0 0.0
    %336 = vmatprep.subr.mxu0 0.0
    %337 = vmatpush1.msra.mxu0 0.0
    %338 = vmatprep.subr.mxu0 0.0
    %339 = vmatpush1.msra.mxu0 0.0
    %340 = vmatprep.subr.mxu0 0.0
    %341 = vmatpush1.msra.mxu0 0.0
    %342 = vmatprep.subr.mxu0 0.0
    %343 = vmatpush1.msra.mxu0 0.0
    %344 = vmatprep.subr.mxu0 0.0
    %345 = vmatpush1.msra.mxu0 0.0
    %346 = vmatprep.subr.mxu0 0.0
    %347 = vmatpush1.msra.mxu0 0.0
    %348 = vmatprep.subr.mxu0 0.0
    %349 = vmatpush1.msra.mxu0 0.0
    %350 = vmatprep.subr.mxu0 0.0
    %351 = vmatpush1.msra.mxu0 0.0
    %352 = vmatprep.subr.mxu0 0.0
    %353 = vmatpush1.msra.mxu0 0.0
    %354 = vmatprep.subr.mxu0 0.0
    %355 = vmatpush1.msra.mxu0 0.0
    %356 = vmatprep.subr.mxu0 0.0
    %357 = vmatpush1.msra.mxu0 0.0
    %358 = vmatprep.subr.mxu0 0.0
    %359 = vmatpush1.msra.mxu0 0.0
    %360 = vmatprep.subr.mxu0 0.0
    %361 = vmatpush1.msra.mxu0 0.0
    %362 = vmatprep.subr.mxu0 0.0
    %363 = vmatpush1.msra.mxu0 0.0
    %364 = vmatprep.subr.mxu0 0.0
    %365 = vmatpush1.msra.mxu0 0.0
    %366 = vmatprep.mubr.f32.mxu0 0.0
    %367 = vmatmul.mubr.f32.gmra.mrb[0].mxu0 %v166
    %v368 = vpop.f32.mrb[0].mxu0
    %v369 = vadd.f32 0.0, %v368
    %v370 = vpop.f32.mrb[0].mxu0
    %v371 = vadd.f32 0.0, %v370
    %372 = vdwg.mxu0
    %373 = vmatprep.subr.mxu0 %v103
    %374 = vmatpush1.msra.mxu0 %v102
    %375 = vmatprep.subr.mxu0 %v107
    %376 = vmatpush1.msra.mxu0 %v106
    %377 = vmatprep.subr.mxu0 %v111
    %378 = vmatpush1.msra.mxu0 %v110
    %379 = vmatprep.subr.mxu0 %v115
    %380 = vmatpush1.msra.mxu0 %v114
    %381 = vmatprep.subr.mxu0 %v119
    %382 = vmatpush1.msra.mxu0 %v118
    %383 = vmatprep.subr.mxu0 %v123
    %384 = vmatpush1.msra.mxu0 %v122
    %385 = vmatprep.subr.mxu0 %v127
    %386 = vmatpush1.msra.mxu0 %v126
    %387 = vmatprep.subr.mxu0 %v131
    %388 = vmatpush1.msra.mxu0 %v130
    %389 = vmatprep.subr.mxu0 %v135
    %390 = vmatpush1.msra.mxu0 %v134
    %391 = vmatprep.subr.mxu0 %v139
    %392 = vmatpush1.msra.mxu0 %v138
    %393 = vmatprep.subr.mxu0 %v143
    %394 = vmatpush1.msra.mxu0 %v142
    %395 = vmatprep.subr.mxu0 %v147
    %396 = vmatpush1.msra.mxu0 %v146
    %397 = vmatprep.subr.mxu0 %v151
    %398 = vmatpush1.msra.mxu0 %v150
    %399 = vmatprep.subr.mxu0 %v155
    %400 = vmatpush1.msra.mxu0 %v154
    %401 = vmatprep.subr.mxu0 %v159
    %402 = vmatpush1.msra.mxu0 %v158
    %403 = vmatprep.subr.mxu0 %v163
    %404 = vmatpush1.msra.mxu0 %v162
    %405 = vmatprep.subr.mxu0 0.0
    %406 = vmatpush1.msra.mxu0 0.0
    %407 = vmatprep.subr.mxu0 0.0
    %408 = vmatpush1.msra.mxu0 0.0
    %409 = vmatprep.subr.mxu0 0.0
    %410 = vmatpush1.msra.mxu0 0.0
    %411 = vmatprep.subr.mxu0 0.0
    %412 = vmatpush1.msra.mxu0 0.0
    %413 = vmatprep.subr.mxu0 0.0
    %414 = vmatpush1.msra.mxu0 0.0
    %415 = vmatprep.subr.mxu0 0.0
    %416 = vmatpush1.msra.mxu0 0.0
    %417 = vmatprep.subr.mxu0 0.0
    %418 = vmatpush1.msra.mxu0 0.0
    %419 = vmatprep.subr.mxu0 0.0
    %420 = vmatpush1.msra.mxu0 0.0
    %421 = vmatprep.subr.mxu0 0.0
    %422 = vmatpush1.msra.mxu0 0.0
    %423 = vmatprep.subr.mxu0 0.0
    %424 = vmatpush1.msra.mxu0 0.0
    %425 = vmatprep.subr.mxu0 0.0
    %426 = vmatpush1.msra.mxu0 0.0
    %427 = vmatprep.subr.mxu0 0.0
    %428 = vmatpush1.msra.mxu0 0.0
    %429 = vmatprep.subr.mxu0 0.0
    %430 = vmatpush1.msra.mxu0 0.0
    %431 = vmatprep.subr.mxu0 0.0
    %432 = vmatpush1.msra.mxu0 0.0
    %433 = vmatprep.subr.mxu0 0.0
    %434 = vmatpush1.msra.mxu0 0.0
    %435 = vmatprep.subr.mxu0 0.0
    %436 = vmatpush1.msra.mxu0 0.0
    %437 = vmatprep.mubr.f32.mxu0 0.0
    %438 = vmatmul.mubr.f32.gmra.mrb[0].mxu0 %v101
    %v439 = vpop.f32.mrb[0].mxu0
    %v440 = vadd.f32 %v298, %v439
    %v441 = vpop.f32.mrb[0].mxu0
    %v442 = vadd.f32 %v300, %v441
    %443 = vdwg.mxu0
    %444 = vmatprep.subr.mxu0 %v105
    %445 = vmatpush1.msra.mxu0 %v104
    %446 = vmatprep.subr.mxu0 %v109
    %447 = vmatpush1.msra.mxu0 %v108
    %448 = vmatprep.subr.mxu0 %v113
    %449 = vmatpush1.msra.mxu0 %v112
    %450 = vmatprep.subr.mxu0 %v117
    %451 = vmatpush1.msra.mxu0 %v116
    %452 = vmatprep.subr.mxu0 %v121
    %453 = vmatpush1.msra.mxu0 %v120
    %454 = vmatprep.subr.mxu0 %v125
    %455 = vmatpush1.msra.mxu0 %v124
    %456 = vmatprep.subr.mxu0 %v129
    %457 = vmatpush1.msra.mxu0 %v128
    %458 = vmatprep.subr.mxu0 %v133
    %459 = vmatpush1.msra.mxu0 %v132
    %460 = vmatprep.subr.mxu0 %v137
    %461 = vmatpush1.msra.mxu0 %v136
    %462 = vmatprep.subr.mxu0 %v141
    %463 = vmatpush1.msra.mxu0 %v140
    %464 = vmatprep.subr.mxu0 %v145
    %465 = vmatpush1.msra.mxu0 %v144
    %466 = vmatprep.subr.mxu0 %v149
    %467 = vmatpush1.msra.mxu0 %v148
    %468 = vmatprep.subr.mxu0 %v153
    %469 = vmatpush1.msra.mxu0 %v152
    %470 = vmatprep.subr.mxu0 %v157
    %471 = vmatpush1.msra.mxu0 %v156
    %472 = vmatprep.subr.mxu0 %v161
    %473 = vmatpush1.msra.mxu0 %v160
    %474 = vmatprep.subr.mxu0 %v165
    %475 = vmatpush1.msra.mxu0 %v164
    %476 = vmatprep.subr.mxu0 0.0
    %477 = vmatpush1.msra.mxu0 0.0
    %478 = vmatprep.subr.mxu0 0.0
    %479 = vmatpush1.msra.mxu0 0.0
    %480 = vmatprep.subr.mxu0 0.0
    %481 = vmatpush1.msra.mxu0 0.0
    %482 = vmatprep.subr.mxu0 0.0
    %483 = vmatpush1.msra.mxu0 0.0
    %484 = vmatprep.subr.mxu0 0.0
    %485 = vmatpush1.msra.mxu0 0.0
    %486 = vmatprep.subr.mxu0 0.0
    %487 = vmatpush1.msra.mxu0 0.0
    %488 = vmatprep.subr.mxu0 0.0
    %489 = vmatpush1.msra.mxu0 0.0
    %490 = vmatprep.subr.mxu0 0.0
    %491 = vmatpush1.msra.mxu0 0.0
    %492 = vmatprep.subr.mxu0 0.0
    %493 = vmatpush1.msra.mxu0 0.0
    %494 = vmatprep.subr.mxu0 0.0
    %495 = vmatpush1.msra.mxu0 0.0
    %496 = vmatprep.subr.mxu0 0.0
    %497 = vmatpush1.msra.mxu0 0.0
    %498 = vmatprep.subr.mxu0 0.0
    %499 = vmatpush1.msra.mxu0 0.0
    %500 = vmatprep.subr.mxu0 0.0
    %501 = vmatpush1.msra.mxu0 0.0
    %502 = vmatprep.subr.mxu0 0.0
    %503 = vmatpush1.msra.mxu0 0.0
    %504 = vmatprep.subr.mxu0 0.0
    %505 = vmatpush1.msra.mxu0 0.0
    %506 = vmatprep.subr.mxu0 0.0
    %507 = vmatpush1.msra.mxu0 0.0
    %508 = vmatprep.mubr.f32.mxu0 0.0
    %509 = vmatmul.mubr.f32.gmra.mrb[0].mxu0 %v101
    %v510 = vpop.f32.mrb[0].mxu0
    %v511 = vadd.f32 %v369, %v510
    %v512 = vpop.f32.mrb[0].mxu0
    %v513 = vadd.f32 %v371, %v512
    %514 = vdwg.mxu0
    %v515 = vld [vmem:[#allocation11] sm:$0xf]
    %v517 = vlaneseq
    %v518 = vshrl.u32 %v517, 7
    %v519 = vsub.s32 0, %v518
    %v520 = vrot.slane %v515, %v519
    %v521 = vlaneseq
    %v522 = vshrl.u32 %v521, 7
    %v523 = vsub.s32 1, %v522
    %v524 = vrot.slane %v515, %v523
    %v525 = vlaneseq
    %v526 = vshrl.u32 %v525, 7
    %v527 = vsub.s32 2, %v526
    %v528 = vrot.slane %v515, %v527
    %v529 = vlaneseq
    %v530 = vshrl.u32 %v529, 7
    %v531 = vsub.s32 3, %v530
    %v532 = vrot.slane %v515, %v531
    %v537 = vadd.f32 %v440, %v520
    %v538 = vadd.f32 %v442, %v524
    %v539 = vadd.f32 %v511, %v528
    %v540 = vadd.f32 %v513, %v532
    %v541 = vxor.u32 %v537, 2147483648
    %v542 = vmul.f32 %v541, 1.442695
    %v543 = vpow.pop %v542
    %v544 = vadd.f32 %v543, 1.0
    %v545 = vrcp.pop %v544
    %v546 = vmul.f32 1.0, %v545
    %v547 = vxor.u32 %v538, 2147483648
    %v548 = vmul.f32 %v547, 1.442695
    %v549 = vpow.pop %v548
    %v550 = vadd.f32 %v549, 1.0
    %v551 = vrcp.pop %v550
    %v552 = vmul.f32 1.0, %v551
    %v553 = vtanh.pop %v539
    %v554 = vxor.u32 %v540, 2147483648
    %v555 = vmul.f32 %v554, 1.442695
    %v556 = vpow.pop %v555
    %v557 = vadd.f32 %v556, 1.0
    %v558 = vrcp.pop %v557
    %v559 = vmul.f32 1.0, %v558
    %v560 = vld [vmem:[#allocation7] sm:$0xff]
    %v561 = vmul.f32 %v560, %v552
    %v562 = vmul.f32 %v546, %v553
    %v563 = vadd.f32 %v561, %v562
    %v564 = vtanh.pop %v563
    %v565 = vmul.f32 %v559, %v564
    %566 = vst [vmem:[#allocation14] sm:$0xff] %v563
    %567 = vst [vmem:[#allocation13] sm:$0xff] %v565
    // Predicated region
    $region50: #{_lstm_cell_step.1} parent=1 // pred_check
      _
    $region51: #{_lstm_cell_step.1} parent=1 // pred_check_branch
      %569 = sbr.rel (0) target = $region53
    $region52: #{_lstm_cell_step.1} parent=1 // pred_region
      %s571 = ssub.s32 128, 128
      %572 = vsyncadd [#allocation4], %s571
      %s574 = sshll.u32 [#allocation13], 4
      %s575 = int_to_ptr.vmem [resolvable:$true] %s574
      %577 = dma.vmem_to_hbm [thread:$0]  %s575, 128, %s6, [#allocation4]
    $region53: #{_lstm_cell_step.1} parent=1 // pred_fallthru
      _
    // Predicated region
    $region54: #{_lstm_cell_step.1} parent=1 // pred_check
      _
    $region55: #{_lstm_cell_step.1} parent=1 // pred_check_branch
      %579 = sbr.rel (0) target = $region57
    $region56: #{_lstm_cell_step.1} parent=1 // pred_region
      %s581 = ssub.s32 128, 128
      %582 = vsyncadd [#allocation15], %s581
      %s584 = sshll.u32 [#allocation14], 4
      %s585 = int_to_ptr.vmem [resolvable:$true] %s584
      %587 = dma.vmem_to_hbm [thread:$0]  %s585, 128, %s7, [#allocation15]
    $region57: #{_lstm_cell_step.1} parent=1 // pred_fallthru
      _
    // Predicated region
    $region58: #{_lstm_cell_step.1} parent=1 // pred_check
      _
    $region59: #{_lstm_cell_step.1} parent=1 // pred_check_branch
      %589 = sbr.rel (0) target = $region61
    $region60: #{_lstm_cell_step.1} parent=1 // pred_region
      %590 = dma.done [#allocation4], 128
    $region61: #{_lstm_cell_step.1} parent=1 // pred_fallthru
      _
    // Predicated region
    $region62: #{_lstm_cell_step.1} parent=1 // pred_check
      _
    $region63: #{_lstm_cell_step.1} parent=1 // pred_check_branch
      %592 = sbr.rel (0) target = $region65
    $region64: #{_lstm_cell_step.1} parent=1 // pred_region
      %593 = dma.done [#allocation15], 128
    $region65: #{_lstm_cell_step.1} parent=1 // pred_fallthru
      _
    %594 = vsyncpa [#allocation3], 1
    %595 = vsyncpa [#allocation6], 1
    %596 = vsyncpa [#allocation9], 1
    %597 = vsyncpa [#allocation12], 1
    %598 = vsyncpa [#allocation4], 1
    %599 = vsyncpa [#allocation15], 1

</llo_original>
